<compile_context>
chip_gen: v6e
topology: v6e:2x2x1
jax: 0.10.0
libtpu: 0.0.40
codegen_flags: <defaults>
</compile_context>

<pallas_src>
import functools

import jax
import jax.numpy as jnp
import numpy as np
from jax.experimental import pallas as pl
from jax.experimental.pallas import tpu as pltpu


def _fofe_kernel(char_ref, bounds_ref, bounds_t_ref, decay_ref, decay_t_ref,
                 w_red_ref, b_red_ref, w_exp_l_ref, w_exp_r_ref, b_exp_ref,
                 out_ref):
    # char_ref   : (Bt, S, D)  bf16        bounds_ref  : (Bt, S, 2) int32
    # bounds_t   : (Bt, 2, S)  int32       decay/decay_t: (S, S) bf16
    # w_red      : (D, Fp) bf16            b_red : (1, Fp) f32
    # w_exp_l/r  : (Fp, D) bf16            b_exp : (1, D)  f32
    # out_ref    : (Bt, S, D) f32
    Bt, S, D = char_ref.shape
    Fp = w_red_ref.shape[1]

    # ---- reduction Linear + ReLU, one big MXU matmul on the flattened slab ----
    x_in = char_ref[...].reshape(Bt * S, D)                       # bf16
    x = jnp.dot(x_in, w_red_ref[...], preferred_element_type=jnp.float32)
    x = jnp.maximum(x + b_red_ref[...], 0.0)                      # (Bt*S, Fp) f32
    x_bf = x.astype(jnp.bfloat16)

    # iota matrices hoisted out of the per-element loop
    col = jax.lax.broadcasted_iota(jnp.int32, (S, S), 1)          # column index j
    row = jax.lax.broadcasted_iota(jnp.int32, (S, S), 0)          # row index i
    decay = decay_ref[...]                                        # alpha^(i-j), lower-tri
    decay_t = decay_t_ref[...]                                    # = decay.T (host-built)

    l2r_parts = []
    r2l_parts = []
    # Bt is small and static -> unrolled Python loop, every index is static.
    for b in range(Bt):
        xb = x_bf[b * S:(b + 1) * S, :]                           # (S, Fp)

        bnd = bounds_ref[b]                                       # (S, 2)
        keep = jnp.logical_and(col >= bnd[:, 0:1], col < bnd[:, 1:2])
        fofe = jnp.where(keep, decay, 0.0)                        # (S, S) bf16

        # transposed word-span mask built directly (no in-kernel transpose)
        bnd_t = bounds_t_ref[b]                                   # (2, S)
        keep_t = jnp.logical_and(row >= bnd_t[0:1, :], row < bnd_t[1:2, :])
        fofe_t = jnp.where(keep_t, decay_t, 0.0)                  # (S, S) bf16

        l2r_parts.append(jnp.dot(fofe, xb, preferred_element_type=jnp.float32))
        r2l_parts.append(jnp.dot(fofe_t, xb, preferred_element_type=jnp.float32))

    l2r = l2r_parts[0] if Bt == 1 else jnp.concatenate(l2r_parts, axis=0)
    r2l = r2l_parts[0] if Bt == 1 else jnp.concatenate(r2l_parts, axis=0)

    # ---- expansion Linear with split weights (no lane-axis concat) ----
    out = jnp.dot(l2r.astype(jnp.bfloat16), w_exp_l_ref[...],
                  preferred_element_type=jnp.float32)
    out = out + jnp.dot(r2l.astype(jnp.bfloat16), w_exp_r_ref[...],
                        preferred_element_type=jnp.float32)
    out = out + b_exp_ref[...]                                    # (Bt*S, D)
    out_ref[...] = out.reshape(Bt, S, D).astype(out_ref.dtype)


def fofe_layer(char_inputs, word_left_bound, word_right_bound, params,
               *, alpha=0.5, max_len=128, block_b=None):
    """Pallas implementation of FOFELayer.forward (mode='concat', seg_* = None)."""
    B, S, D = char_inputs.shape
    F = params["w_red"].shape[1]
    Fp = max(128, ((F + 127) // 128) * 128)     # lane-dense fofe dim

    # ---- static decay matrices, precomputed on host -> jit constants ----
    i = np.arange(S)[:, None]
    j = np.arange(S)[None, :]
    base = np.mod(i - j, max_len).astype(np.float64)
    decay_np = np.where(j <= i, float(alpha) ** base, 0.0).astype(np.float32)
    decay = jnp.asarray(decay_np, dtype=jnp.bfloat16)
    decay_t = jnp.asarray(np.ascontiguousarray(decay_np.T), dtype=jnp.bfloat16)

    # ---- weights: bf16, fofe dim zero-padded to Fp, expansion weight split ----
    w_red = jnp.zeros((D, Fp), jnp.bfloat16).at[:, :F].set(
        params["w_red"].astype(jnp.bfloat16))
    b_red = jnp.zeros((1, Fp), jnp.float32).at[:, :F].set(
        params["b_red"].reshape(1, F).astype(jnp.float32))
    w_exp_bf = params["w_exp"].astype(jnp.bfloat16)               # (2F, D)
    w_exp_l = jnp.zeros((Fp, D), jnp.bfloat16).at[:F].set(w_exp_bf[:F])
    w_exp_r = jnp.zeros((Fp, D), jnp.bfloat16).at[:F].set(w_exp_bf[F:])
    b_exp = params["b_exp"].reshape(1, D).astype(jnp.float32)

    # ---- bounds packed once: row-mask layout (B,S,2) and transposed (B,2,S) ----
    lb = word_left_bound.astype(jnp.int32)
    rb = word_right_bound.astype(jnp.int32)
    bounds = jnp.stack([lb, rb], axis=-1)                         # (B, S, 2)
    bounds_t = jnp.stack([lb, rb], axis=1)                        # (B, 2, S)

    char_bf = char_inputs.astype(jnp.bfloat16)                    # halve DMA bytes

    # ---- batch blocking: ~2 grid steps (v7x megacore) with maximal per-step Bt ----
    if block_b is None:
        block_b = max(1, min(8, -(-B // 2)))
    Bt = min(block_b, B)
    n_blocks = -(-B // Bt)
    B_pad = n_blocks * Bt
    if B_pad != B:
        pad_b = B_pad - B
        char_bf = jnp.pad(char_bf, ((0, pad_b), (0, 0), (0, 0)))
        bounds = jnp.pad(bounds, ((0, pad_b), (0, 0), (0, 0)))
        bounds_t = jnp.pad(bounds_t, ((0, pad_b), (0, 0), (0, 0)))

    grid_spec = pltpu.PrefetchScalarGridSpec(
        num_scalar_prefetch=0,
        grid=(n_blocks,),
        in_specs=[
            pl.BlockSpec((Bt, S, D), lambda b: (b, 0, 0)),        # char (bf16)
            pl.BlockSpec((Bt, S, 2), lambda b: (b, 0, 0)),        # bounds
            pl.BlockSpec((Bt, 2, S), lambda b: (b, 0, 0)),        # bounds (transposed)
            pl.BlockSpec((S, S), lambda b: (0, 0)),               # decay
            pl.BlockSpec((S, S), lambda b: (0, 0)),               # decay^T
            pl.BlockSpec((D, Fp), lambda b: (0, 0)),              # W_red
            pl.BlockSpec((1, Fp), lambda b: (0, 0)),              # b_red
            pl.BlockSpec((Fp, D), lambda b: (0, 0)),              # W_exp (l2r half)
            pl.BlockSpec((Fp, D), lambda b: (0, 0)),              # W_exp (r2l half)
            pl.BlockSpec((1, D), lambda b: (0, 0)),               # b_exp
        ],
        out_specs=pl.BlockSpec((Bt, S, D), lambda b: (b, 0, 0)),
    )

    flops = 2 * B_pad * S * (D * Fp + 2 * S * Fp + 2 * Fp * D)
    bytes_accessed = (B_pad * S * D * (2 + 4)        # char in (bf16) + out (f32)
                      + B_pad * S * 2 * 4 * 2        # packed bounds (two layouts)
                      + 2 * S * S * 2                # decay + decay^T (bf16)
                      + 3 * Fp * D * 2               # W_red + both W_exp halves
                      + (Fp + D) * 4)                # biases
    cost = pl.CostEstimate(flops=flops, transcendentals=0,
                           bytes_accessed=bytes_accessed)

    out = pl.pallas_call(
        _fofe_kernel,
        out_shape=jax.ShapeDtypeStruct((B_pad, S, D), jnp.float32),
        grid_spec=grid_spec,
        compiler_params=pltpu.CompilerParams(
            dimension_semantics=("parallel",)),
        cost_estimate=cost,
    )(char_bf, bounds, bounds_t, decay, decay_t,
      w_red, b_red, w_exp_l, w_exp_r, b_exp)

    return out[:B] if B_pad != B else out


def fofe_layer_ref(char_inputs, word_left_bound, word_right_bound, params,
                   *, alpha=0.5, max_len=128):
    """Pure-JAX f32 reference mirroring the PyTorch forward (concat, no seg)."""
    B, S, D = char_inputs.shape
    x = jax.nn.relu(char_inputs @ params["w_red"] + params["b_red"])

    i = jnp.arange(S)[:, None]
    j = jnp.arange(S)[None, :]
    base = jnp.mod(i - j, max_len).astype(jnp.float32)
    decay = jnp.where(j <= i, jnp.float32(alpha) ** base, 0.0)    # (S, S)

    j_idx = jnp.arange(S)[None, None, :]
    keep = jnp.logical_and(j_idx >= word_left_bound[:, :, None],
                           j_idx < word_right_bound[:, :, None])  # (B, S, S)
    fofe_l2r = jnp.where(keep, decay[None], 0.0)

    l2r_out = jnp.einsum("bij,bjf->bif", fofe_l2r, x)
    r2l_out = jnp.einsum("bji,bjf->bif", fofe_l2r, x)
    cat = jnp.concatenate([l2r_out, r2l_out], axis=-1)
    return cat @ params["w_exp"] + params["b_exp"]


if __name__ == "__main__":
    # Small, aligned shapes consistent with the module defaults (fofe_dim=64).
    S, D, F = 64, 256, 64
    MAX_LEN, ALPHA = 128, 0.5

    key = jax.random.PRNGKey(0)
    k_wr, k_we, k_char = jax.random.split(key, 3)

    # Deterministic parameter init (PyTorch init zeroes everything -> degenerate).
    params = {
        "w_red": 0.02 * jax.random.normal(k_wr, (D, F), dtype=jnp.float32),
        "b_red": jnp.zeros((F,), dtype=jnp.float32),
        "w_exp": 0.02 * jax.random.normal(k_we, (2 * F, D), dtype=jnp.float32),
        "b_exp": jnp.zeros((D,), dtype=jnp.float32),
    }

    def make_inputs(batch, subkey):
        char = jax.random.normal(subkey, (batch, S, D), dtype=jnp.float32)
        pos = np.arange(S)
        left_np = (pos // 5) * 5                      # fixed word length 5
        right_np = np.minimum(left_np + 5, S)
        left = jnp.asarray(np.broadcast_to(left_np, (batch, S)), dtype=jnp.int32)
        right = jnp.asarray(np.broadcast_to(right_np, (batch, S)), dtype=jnp.int32)
        return char, left, right

    checks = [
        (2, None),   # default: Bt=1, grid=(2,)  -> feeds v7x's 2 TensorCores
        (2, 2),      # fully batched: Bt=2, grid=(1,)  -> single-TC v5e/v6e style
        (3, 2),      # odd batch: exercises the batch-padding path
    ]
    keys = jax.random.split(k_char, len(checks))
    for (batch, block_b), sk in zip(checks, keys):
        char, left, right = make_inputs(batch, sk)
        run = jax.jit(functools.partial(fofe_layer, alpha=ALPHA,
                                        max_len=MAX_LEN, block_b=block_b))
        out = jax.block_until_ready(run(char, left, right, params))
        ref = fofe_layer_ref(char, left, right, params,
                             alpha=ALPHA, max_len=MAX_LEN)
        # bf16 MXU operands with f32 accumulation -> loosened tolerances.
        np.testing.assert_allclose(np.asarray(out), np.asarray(ref),
                                   rtol=2e-2, atol=5e-3)

    print("KERNEL_OK")
</pallas_src>

<mosaic_0001>
module attributes {stable_mosaic.version = 11 : i64} {
  func.func @_fofe_kernel(%arg0: i32, %arg1: memref<1x64x256xbf16, #tpu.memory_space<vmem>>, %arg2: memref<1x64x2xi32, #tpu.memory_space<vmem>>, %arg3: memref<1x2x64xi32, #tpu.memory_space<vmem>>, %arg4: memref<64x64xbf16, #tpu.memory_space<vmem>>, %arg5: memref<64x64xbf16, #tpu.memory_space<vmem>>, %arg6: memref<256x128xbf16, #tpu.memory_space<vmem>>, %arg7: memref<1x128xf32, #tpu.memory_space<vmem>>, %arg8: memref<128x256xbf16, #tpu.memory_space<vmem>>, %arg9: memref<128x256xbf16, #tpu.memory_space<vmem>>, %arg10: memref<1x256xf32, #tpu.memory_space<vmem>>, %arg11: memref<1x64x256xf32, #tpu.memory_space<vmem>>) attributes {dimension_semantics = [#tpu.dimension_semantics<parallel>], iteration_bounds = array<i64: 2>, scalar_prefetch = 0 : i64, scratch_operands = 0 : i64, tpu.core_type = #tpu.core_type<tc>, window_params = [{transform_indices = @transform_0, window_bounds = array<i64: 1, 64, 256>}, {transform_indices = @transform_1, window_bounds = array<i64: 1, 64, 2>}, {transform_indices = @transform_2, window_bounds = array<i64: 1, 2, 64>}, {pipeline_mode = #tpu.pipeline_mode<synchronous>, transform_indices = @transform_3, window_bounds = array<i64: 64, 64>}, {pipeline_mode = #tpu.pipeline_mode<synchronous>, transform_indices = @transform_4, window_bounds = array<i64: 64, 64>}, {pipeline_mode = #tpu.pipeline_mode<synchronous>, transform_indices = @transform_5, window_bounds = array<i64: 256, 128>}, {pipeline_mode = #tpu.pipeline_mode<synchronous>, transform_indices = @transform_6, window_bounds = array<i64: 1, 128>}, {pipeline_mode = #tpu.pipeline_mode<synchronous>, transform_indices = @transform_7, window_bounds = array<i64: 128, 256>}, {pipeline_mode = #tpu.pipeline_mode<synchronous>, transform_indices = @transform_8, window_bounds = array<i64: 128, 256>}, {pipeline_mode = #tpu.pipeline_mode<synchronous>, transform_indices = @transform_9, window_bounds = array<i64: 1, 256>}, {transform_indices = @transform_10, window_bounds = array<i64: 1, 64, 256>}]} {
    %c0 = arith.constant 0 : index
    %c0_0 = arith.constant 0 : index
    %c0_1 = arith.constant 0 : index
    %0 = vector.load %arg1[%c0, %c0_0, %c0_1] : memref<1x64x256xbf16, #tpu.memory_space<vmem>>, vector<1x64x256xbf16>
    %1 = vector.shape_cast %0 : vector<1x64x256xbf16> to vector<64x256xbf16>
    %c0_2 = arith.constant 0 : index
    %c0_3 = arith.constant 0 : index
    %2 = vector.load %arg6[%c0_2, %c0_3] : memref<256x128xbf16, #tpu.memory_space<vmem>>, vector<256x128xbf16>
    %cst = arith.constant dense<0.000000e+00> : vector<64x128xf32>
    %3 = tpu.matmul %1, %2, %cst {dimension_numbers = #tpu.dot_dimension_numbers<[1], [0], [0], [1], [0, 0, 1, 1], [], []>} : vector<64x256xbf16>, vector<256x128xbf16>, vector<64x128xf32> -> vector<64x128xf32>
    %c0_4 = arith.constant 0 : index
    %c0_5 = arith.constant 0 : index
    %4 = vector.load %arg7[%c0_4, %c0_5] : memref<1x128xf32, #tpu.memory_space<vmem>>, vector<1x128xf32>
    %5 = vector.broadcast %4 : vector<1x128xf32> to vector<64x128xf32>
    %6 = arith.addf %3, %5 : vector<64x128xf32>
    %cst_6 = arith.constant 0.000000e+00 : f32
    %7 = vector.broadcast %cst_6 : f32 to vector<64x128xf32>
    %8 = arith.maximumf %6, %7 : vector<64x128xf32>
    %9 = arith.truncf %8 : vector<64x128xf32> to vector<64x128xbf16>
    %10 = tpu.iota {dimensions = array<i32: 1>} : vector<64x64xi32>
    %11 = tpu.iota {dimensions = array<i32: 0>} : vector<64x64xi32>
    %c0_7 = arith.constant 0 : index
    %c0_8 = arith.constant 0 : index
    %12 = vector.load %arg4[%c0_7, %c0_8] : memref<64x64xbf16, #tpu.memory_space<vmem>>, vector<64x64xbf16>
    %c0_9 = arith.constant 0 : index
    %c0_10 = arith.constant 0 : index
    %13 = vector.load %arg5[%c0_9, %c0_10] : memref<64x64xbf16, #tpu.memory_space<vmem>>, vector<64x64xbf16>
    %c0_11 = arith.constant 0 : index
    %c0_12 = arith.constant 0 : index
    %c0_13 = arith.constant 0 : index
    %14 = vector.load %arg2[%c0_11, %c0_12, %c0_13] : memref<1x64x2xi32, #tpu.memory_space<vmem>>, vector<1x64x2xi32>
    %15 = vector.shape_cast %14 : vector<1x64x2xi32> to vector<64x2xi32>
    %16 = vector.extract_strided_slice %15 {offsets = [0, 0], sizes = [64, 1], strides = [1, 1]} : vector<64x2xi32> to vector<64x1xi32>
    %17 = vector.broadcast %16 : vector<64x1xi32> to vector<64x64xi32>
    %18 = arith.cmpi sge, %10, %17 : vector<64x64xi32>
    %19 = vector.extract_strided_slice %15 {offsets = [0, 1], sizes = [64, 1], strides = [1, 1]} : vector<64x2xi32> to vector<64x1xi32>
    %20 = vector.broadcast %19 : vector<64x1xi32> to vector<64x64xi32>
    %21 = arith.cmpi slt, %10, %20 : vector<64x64xi32>
    %22 = arith.andi %18, %21 : vector<64x64xi1>
    %cst_14 = arith.constant 0.000000e+00 : f32
    %23 = arith.truncf %cst_14 : f32 to bf16
    %24 = vector.broadcast %23 : bf16 to vector<64x64xbf16>
    %25 = arith.select %22, %12, %24 : vector<64x64xi1>, vector<64x64xbf16>
    %c0_15 = arith.constant 0 : index
    %c0_16 = arith.constant 0 : index
    %c0_17 = arith.constant 0 : index
    %26 = vector.load %arg3[%c0_15, %c0_16, %c0_17] : memref<1x2x64xi32, #tpu.memory_space<vmem>>, vector<1x2x64xi32>
    %27 = vector.shape_cast %26 : vector<1x2x64xi32> to vector<2x64xi32>
    %28 = vector.extract_strided_slice %27 {offsets = [0, 0], sizes = [1, 64], strides = [1, 1]} : vector<2x64xi32> to vector<1x64xi32>
    %29 = vector.broadcast %28 : vector<1x64xi32> to vector<64x64xi32>
    %30 = arith.cmpi sge, %11, %29 : vector<64x64xi32>
    %31 = vector.extract_strided_slice %27 {offsets = [1, 0], sizes = [1, 64], strides = [1, 1]} : vector<2x64xi32> to vector<1x64xi32>
    %32 = vector.broadcast %31 : vector<1x64xi32> to vector<64x64xi32>
    %33 = arith.cmpi slt, %11, %32 : vector<64x64xi32>
    %34 = arith.andi %30, %33 : vector<64x64xi1>
    %cst_18 = arith.constant 0.000000e+00 : f32
    %35 = arith.truncf %cst_18 : f32 to bf16
    %36 = vector.broadcast %35 : bf16 to vector<64x64xbf16>
    %37 = arith.select %34, %13, %36 : vector<64x64xi1>, vector<64x64xbf16>
    %cst_19 = arith.constant dense<0.000000e+00> : vector<64x128xf32>
    %38 = tpu.matmul %25, %9, %cst_19 {dimension_numbers = #tpu.dot_dimension_numbers<[1], [0], [0], [1], [0, 0, 1, 1], [], []>} : vector<64x64xbf16>, vector<64x128xbf16>, vector<64x128xf32> -> vector<64x128xf32>
    %cst_20 = arith.constant dense<0.000000e+00> : vector<64x128xf32>
    %39 = tpu.matmul %37, %9, %cst_20 {dimension_numbers = #tpu.dot_dimension_numbers<[1], [0], [0], [1], [0, 0, 1, 1], [], []>} : vector<64x64xbf16>, vector<64x128xbf16>, vector<64x128xf32> -> vector<64x128xf32>
    %40 = arith.truncf %38 : vector<64x128xf32> to vector<64x128xbf16>
    %c0_21 = arith.constant 0 : index
    %c0_22 = arith.constant 0 : index
    %41 = vector.load %arg8[%c0_21, %c0_22] : memref<128x256xbf16, #tpu.memory_space<vmem>>, vector<128x256xbf16>
    %cst_23 = arith.constant dense<0.000000e+00> : vector<64x256xf32>
    %42 = tpu.matmul %40, %41, %cst_23 {dimension_numbers = #tpu.dot_dimension_numbers<[1], [0], [0], [1], [0, 0, 1, 1], [], []>} : vector<64x128xbf16>, vector<128x256xbf16>, vector<64x256xf32> -> vector<64x256xf32>
    %43 = arith.truncf %39 : vector<64x128xf32> to vector<64x128xbf16>
    %c0_24 = arith.constant 0 : index
    %c0_25 = arith.constant 0 : index
    %44 = vector.load %arg9[%c0_24, %c0_25] : memref<128x256xbf16, #tpu.memory_space<vmem>>, vector<128x256xbf16>
    %cst_26 = arith.constant dense<0.000000e+00> : vector<64x256xf32>
    %45 = tpu.matmul %43, %44, %cst_26 {dimension_numbers = #tpu.dot_dimension_numbers<[1], [0], [0], [1], [0, 0, 1, 1], [], []>} : vector<64x128xbf16>, vector<128x256xbf16>, vector<64x256xf32> -> vector<64x256xf32>
    %46 = arith.addf %42, %45 : vector<64x256xf32>
    %c0_27 = arith.constant 0 : index
    %c0_28 = arith.constant 0 : index
    %47 = vector.load %arg10[%c0_27, %c0_28] : memref<1x256xf32, #tpu.memory_space<vmem>>, vector<1x256xf32>
    %48 = vector.broadcast %47 : vector<1x256xf32> to vector<64x256xf32>
    %49 = arith.addf %46, %48 : vector<64x256xf32>
    %50 = vector.shape_cast %49 : vector<64x256xf32> to vector<1x64x256xf32>
    %c0_29 = arith.constant 0 : index
    %c0_30 = arith.constant 0 : index
    %c0_31 = arith.constant 0 : index
    %51 = vector.load %arg11[%c0_29, %c0_30, %c0_31] : memref<1x64x256xf32, #tpu.memory_space<vmem>>, vector<1x64x256xf32>
    tpu.vector_store %arg11[%c0_29, %c0_30, %c0_31], %50 {strides = array<i32>} : memref<1x64x256xf32, #tpu.memory_space<vmem>>, vector<1x64x256xf32>,
    return
  }
  func.func @transform_0(%arg0: i32) -> (i32, i32, i32) {
    %c0_i32 = arith.constant 0 : i32
    %c0_i32_0 = arith.constant 0 : i32
    %c0_i32_1 = arith.constant 0 : i32
    return %arg0, %c0_i32, %c0_i32_0 : i32, i32, i32
  }
  func.func @transform_1(%arg0: i32) -> (i32, i32, i32) {
    %c0_i32 = arith.constant 0 : i32
    %c0_i32_0 = arith.constant 0 : i32
    %c0_i32_1 = arith.constant 0 : i32
    return %arg0, %c0_i32, %c0_i32_0 : i32, i32, i32
  }
  func.func @transform_2(%arg0: i32) -> (i32, i32, i32) {
    %c0_i32 = arith.constant 0 : i32
    %c0_i32_0 = arith.constant 0 : i32
    %c0_i32_1 = arith.constant 0 : i32
    return %arg0, %c0_i32, %c0_i32_0 : i32, i32, i32
  }
  func.func @transform_3(%arg0: i32) -> (i32, i32) {
    %c0_i32 = arith.constant 0 : i32
    %c0_i32_0 = arith.constant 0 : i32
    %c0_i32_1 = arith.constant 0 : i32
    return %c0_i32, %c0_i32_0 : i32, i32
  }
  func.func @transform_4(%arg0: i32) -> (i32, i32) {
    %c0_i32 = arith.constant 0 : i32
    %c0_i32_0 = arith.constant 0 : i32
    %c0_i32_1 = arith.constant 0 : i32
    return %c0_i32, %c0_i32_0 : i32, i32
  }
  func.func @transform_5(%arg0: i32) -> (i32, i32) {
    %c0_i32 = arith.constant 0 : i32
    %c0_i32_0 = arith.constant 0 : i32
    %c0_i32_1 = arith.constant 0 : i32
    return %c0_i32, %c0_i32_0 : i32, i32
  }
  func.func @transform_6(%arg0: i32) -> (i32, i32) {
    %c0_i32 = arith.constant 0 : i32
    %c0_i32_0 = arith.constant 0 : i32
    %c0_i32_1 = arith.constant 0 : i32
    return %c0_i32, %c0_i32_0 : i32, i32
  }
  func.func @transform_7(%arg0: i32) -> (i32, i32) {
    %c0_i32 = arith.constant 0 : i32
    %c0_i32_0 = arith.constant 0 : i32
    %c0_i32_1 = arith.constant 0 : i32
    return %c0_i32, %c0_i32_0 : i32, i32
  }
  func.func @transform_8(%arg0: i32) -> (i32, i32) {
    %c0_i32 = arith.constant 0 : i32
    %c0_i32_0 = arith.constant 0 : i32
    %c0_i32_1 = arith.constant 0 : i32
    return %c0_i32, %c0_i32_0 : i32, i32
  }
  func.func @transform_9(%arg0: i32) -> (i32, i32) {
    %c0_i32 = arith.constant 0 : i32
    %c0_i32_0 = arith.constant 0 : i32
    %c0_i32_1 = arith.constant 0 : i32
    return %c0_i32, %c0_i32_0 : i32, i32
  }
  func.func @transform_10(%arg0: i32) -> (i32, i32, i32) {
    %c0_i32 = arith.constant 0 : i32
    %c0_i32_0 = arith.constant 0 : i32
    %c0_i32_1 = arith.constant 0 : i32
    return %arg0, %c0_i32, %c0_i32_0 : i32, i32, i32
  }
}

</mosaic_0001>

<llo_original>
// kernel: fofe_layer.1
$region0: #{fofe_layer.1}
  #allocation0 [shape = 'u32[]', space=smem, size = 0x4, offset = 0x4, fixed_abs, tag = 'smem constant byte address 0x4 - core index']
  #allocation1 [shape = 'u32[144,128]{1,0:T(1,128)}', space=vmem, size = 0x12000, scoped, tag = 'internal scratch']
  %s0 = inlined_call_operand.vmem [shape: bf16[2,64,256], index: 0, kind: input, shape index: {}]
  %s1 = inlined_call_operand.vmem [shape: s32[2,64,2], index: 1, kind: input, shape index: {}]
  %s2 = inlined_call_operand.vmem [shape: s32[2,2,64], index: 2, kind: input, shape index: {}]
  %s3 = inlined_call_operand.vmem [shape: bf16[64,64], index: 3, kind: input, shape index: {}]
  %s4 = inlined_call_operand.vmem [shape: bf16[64,64], index: 4, kind: input, shape index: {}]
  %s5 = inlined_call_operand.vmem [shape: bf16[256,128], index: 5, kind: input, shape index: {}]
  %s6 = inlined_call_operand.vmem [shape: f32[1,128], index: 6, kind: input, shape index: {}]
  %s7 = inlined_call_operand.vmem [shape: bf16[128,256], index: 7, kind: input, shape index: {}]
  %s8 = inlined_call_operand.vmem [shape: bf16[128,256], index: 8, kind: input, shape index: {}]
  %s9 = inlined_call_operand.vmem [shape: f32[1,256], index: 9, kind: input, shape index: {}]
  %s10 = inlined_call_operand.hbm [shape: f32[2,64,256], index: 10, kind: output, shape index: {}]
  %s11 = sld [smem:[#allocation0]]
  $region73: #{fofe_layer.1} parent=0
    _
  %s13 = ssub.s32 1, %s11
  %s14 = scalar_select 0, %s13, %s11
  $region1: #{fofe_layer.1} parent=0
    #allocation2 [shape = 'u8[131072]{0}', space=vmem, size = 0x20000, scoped, tag = 'output window, operand 0']
    #allocation3 [shape = 's32[2]{0}', space=sflag, size = 0x8, scoped, tag = 'scoped memory for fofe_layer.1']
    %15 = vsyncpa [#allocation3], 0
    %s16 = scalar_lea.sflag [#allocation3], 1
    %17 = vsyncpa %s16, 0
    loop: start=0, step=1, limit=4
    $region2: #{fofe_layer.1} parent=1 // loop_pre_header
      _
    $region3: #{fofe_layer.1} parent=1 // loop_header
      %s19 = sphi 0, %s23
      %p20 = scmp.ge.s32.totalorder %s19, 4
      %s29 = sphi 0, %s31
      %s32 = sphi 0, %s29
      %s33 = sphi 0, %s32
      %s49 = sphi 0, %s33
      %s55 = sphi 0, %s57
      %s58 = sphi 0, %s55
      %s59 = sphi 0, %s58
      %s75 = sphi 0, %s59
      %s81 = sphi 0, %s83
      %s84 = sphi 0, %s81
      %s85 = sphi 0, %s84
      %s101 = sphi 0, %s85
      %s105 = sphi 0, %s105
      %s107 = sphi 0, %s105
      %s108 = sphi 0, %s107
      %s122 = sphi 0, %s108
      %s126 = sphi 0, %s126
      %s128 = sphi 0, %s126
      %s129 = sphi 0, %s128
      %s143 = sphi 0, %s129
      %s147 = sphi 0, %s147
      %s149 = sphi 0, %s147
      %s150 = sphi 0, %s149
      %s164 = sphi 0, %s150
      %s168 = sphi 0, %s168
      %s170 = sphi 0, %s168
      %s171 = sphi 0, %s170
      %s185 = sphi 0, %s171
      %s189 = sphi 0, %s189
      %s191 = sphi 0, %s189
      %s192 = sphi 0, %s191
      %s206 = sphi 0, %s192
      %s210 = sphi 0, %s210
      %s212 = sphi 0, %s210
      %s213 = sphi 0, %s212
      %s227 = sphi 0, %s213
      %s231 = sphi 0, %s231
      %s233 = sphi 0, %s231
      %s234 = sphi 0, %s233
      %s248 = sphi 0, %s234
      %s254 = sphi 0, %s256
      %s257 = sphi 0, %s254
      %s258 = sphi 0, %s257
      %s274 = sphi 0, %s258
    $region4: #{fofe_layer.1} parent=1 // loop_header_branch
      %22 = sbr.rel (%p20) target = $region8
    $region5: #{fofe_layer.1} parent=1 // loop_body
      %s24 = ssub.s32 %s19, 1
      %s25 = ssub.s32 %s19, 2
      %s26 = sadd.s32 %s19, 1
      %s27 = ssub.s32 %s19, %s26
      %p28 = scmp.eq.s32.totalorder %s27, 0
      %s30 = sadd.s32 %s29, 1
      %s31 = scalar_select %p28, %s29, %s30
      %p34 = pneg %p28
      %p35 = scmp.eq.s32.totalorder %s19, 1
      %p36 = por %p34, %p35
      %p37 = scmp.ne.s32.totalorder %s29, %s32
      %p38 = scmp.eq.s32.totalorder %s19, 0
      %p39 = por %p37, %p38
      %p40 = scmp.ne.s32.totalorder %s29, %s32
      %p41 = scmp.eq.s32.totalorder %s24, 1
      %p42 = por %p40, %p41
      %p43 = scmp.ne.s32.totalorder %s32, %s33
      %p44 = scmp.eq.s32.totalorder %s24, 0
      %p45 = por %p43, %p44
      %p46 = scmp.ne.s32.totalorder %s32, %s33
      %p47 = scmp.eq.s32.totalorder %s25, 1
      %p48 = por %p46, %p47
      %p50 = scmp.ne.s32.totalorder %s33, %s49
      %p51 = scmp.eq.s32.totalorder %s25, 0
      %p52 = por %p50, %p51
      %s53 = ssub.s32 %s19, %s26
      %p54 = scmp.eq.s32.totalorder %s53, 0
      %s56 = sadd.s32 %s55, 1
      %s57 = scalar_select %p54, %s55, %s56
      %p60 = pneg %p54
      %p61 = scmp.eq.s32.totalorder %s19, 1
      %p62 = por %p60, %p61
      %p63 = scmp.ne.s32.totalorder %s55, %s58
      %p64 = scmp.eq.s32.totalorder %s19, 0
      %p65 = por %p63, %p64
      %p66 = scmp.ne.s32.totalorder %s55, %s58
      %p67 = scmp.eq.s32.totalorder %s24, 1
      %p68 = por %p66, %p67
      %p69 = scmp.ne.s32.totalorder %s58, %s59
      %p70 = scmp.eq.s32.totalorder %s24, 0
      %p71 = por %p69, %p70
      %p72 = scmp.ne.s32.totalorder %s58, %s59
      %p73 = scmp.eq.s32.totalorder %s25, 1
      %p74 = por %p72, %p73
      %p76 = scmp.ne.s32.totalorder %s59, %s75
      %p77 = scmp.eq.s32.totalorder %s25, 0
      %p78 = por %p76, %p77
      %s79 = ssub.s32 %s19, %s26
      %p80 = scmp.eq.s32.totalorder %s79, 0
      %s82 = sadd.s32 %s81, 1
      %s83 = scalar_select %p80, %s81, %s82
      %p86 = pneg %p80
      %p87 = scmp.eq.s32.totalorder %s19, 1
      %p88 = por %p86, %p87
      %p89 = scmp.ne.s32.totalorder %s81, %s84
      %p90 = scmp.eq.s32.totalorder %s19, 0
      %p91 = por %p89, %p90
      %p92 = scmp.ne.s32.totalorder %s81, %s84
      %p93 = scmp.eq.s32.totalorder %s24, 1
      %p94 = por %p92, %p93
      %p95 = scmp.ne.s32.totalorder %s84, %s85
      %p96 = scmp.eq.s32.totalorder %s24, 0
      %p97 = por %p95, %p96
      %p98 = scmp.ne.s32.totalorder %s84, %s85
      %p99 = scmp.eq.s32.totalorder %s25, 1
      %p100 = por %p98, %p99
      %p102 = scmp.ne.s32.totalorder %s85, %s101
      %p103 = scmp.eq.s32.totalorder %s25, 0
      %p104 = por %p102, %p103
      %s106 = sadd.s32 %s105, 1
      %p109 = scmp.eq.s32.totalorder %s19, 1
      %p110 = scmp.ne.s32.totalorder %s105, %s107
      %p111 = scmp.eq.s32.totalorder %s19, 0
      %p112 = por %p110, %p111
      %p113 = scmp.ne.s32.totalorder %s105, %s107
      %p114 = scmp.eq.s32.totalorder %s24, 1
      %p115 = por %p113, %p114
      %p116 = scmp.ne.s32.totalorder %s107, %s108
      %p117 = scmp.eq.s32.totalorder %s24, 0
      %p118 = por %p116, %p117
      %p119 = scmp.ne.s32.totalorder %s107, %s108
      %p120 = scmp.eq.s32.totalorder %s25, 1
      %p121 = por %p119, %p120
      %p123 = scmp.ne.s32.totalorder %s108, %s122
      %p124 = scmp.eq.s32.totalorder %s25, 0
      %p125 = por %p123, %p124
      %s127 = sadd.s32 %s126, 1
      %p130 = scmp.eq.s32.totalorder %s19, 1
      %p131 = scmp.ne.s32.totalorder %s126, %s128
      %p132 = scmp.eq.s32.totalorder %s19, 0
      %p133 = por %p131, %p132
      %p134 = scmp.ne.s32.totalorder %s126, %s128
      %p135 = scmp.eq.s32.totalorder %s24, 1
      %p136 = por %p134, %p135
      %p137 = scmp.ne.s32.totalorder %s128, %s129
      %p138 = scmp.eq.s32.totalorder %s24, 0
      %p139 = por %p137, %p138
      %p140 = scmp.ne.s32.totalorder %s128, %s129
      %p141 = scmp.eq.s32.totalorder %s25, 1
      %p142 = por %p140, %p141
      %p144 = scmp.ne.s32.totalorder %s129, %s143
      %p145 = scmp.eq.s32.totalorder %s25, 0
      %p146 = por %p144, %p145
      %s148 = sadd.s32 %s147, 1
      %p151 = scmp.eq.s32.totalorder %s19, 1
      %p152 = scmp.ne.s32.totalorder %s147, %s149
      %p153 = scmp.eq.s32.totalorder %s19, 0
      %p154 = por %p152, %p153
      %p155 = scmp.ne.s32.totalorder %s147, %s149
      %p156 = scmp.eq.s32.totalorder %s24, 1
      %p157 = por %p155, %p156
      %p158 = scmp.ne.s32.totalorder %s149, %s150
      %p159 = scmp.eq.s32.totalorder %s24, 0
      %p160 = por %p158, %p159
      %p161 = scmp.ne.s32.totalorder %s149, %s150
      %p162 = scmp.eq.s32.totalorder %s25, 1
      %p163 = por %p161, %p162
      %p165 = scmp.ne.s32.totalorder %s150, %s164
      %p166 = scmp.eq.s32.totalorder %s25, 0
      %p167 = por %p165, %p166
      %s169 = sadd.s32 %s168, 1
      %p172 = scmp.eq.s32.totalorder %s19, 1
      %p173 = scmp.ne.s32.totalorder %s168, %s170
      %p174 = scmp.eq.s32.totalorder %s19, 0
      %p175 = por %p173, %p174
      %p176 = scmp.ne.s32.totalorder %s168, %s170
      %p177 = scmp.eq.s32.totalorder %s24, 1
      %p178 = por %p176, %p177
      %p179 = scmp.ne.s32.totalorder %s170, %s171
      %p180 = scmp.eq.s32.totalorder %s24, 0
      %p181 = por %p179, %p180
      %p182 = scmp.ne.s32.totalorder %s170, %s171
      %p183 = scmp.eq.s32.totalorder %s25, 1
      %p184 = por %p182, %p183
      %p186 = scmp.ne.s32.totalorder %s171, %s185
      %p187 = scmp.eq.s32.totalorder %s25, 0
      %p188 = por %p186, %p187
      %s190 = sadd.s32 %s189, 1
      %p193 = scmp.eq.s32.totalorder %s19, 1
      %p194 = scmp.ne.s32.totalorder %s189, %s191
      %p195 = scmp.eq.s32.totalorder %s19, 0
      %p196 = por %p194, %p195
      %p197 = scmp.ne.s32.totalorder %s189, %s191
      %p198 = scmp.eq.s32.totalorder %s24, 1
      %p199 = por %p197, %p198
      %p200 = scmp.ne.s32.totalorder %s191, %s192
      %p201 = scmp.eq.s32.totalorder %s24, 0
      %p202 = por %p200, %p201
      %p203 = scmp.ne.s32.totalorder %s191, %s192
      %p204 = scmp.eq.s32.totalorder %s25, 1
      %p205 = por %p203, %p204
      %p207 = scmp.ne.s32.totalorder %s192, %s206
      %p208 = scmp.eq.s32.totalorder %s25, 0
      %p209 = por %p207, %p208
      %s211 = sadd.s32 %s210, 1
      %p214 = scmp.eq.s32.totalorder %s19, 1
      %p215 = scmp.ne.s32.totalorder %s210, %s212
      %p216 = scmp.eq.s32.totalorder %s19, 0
      %p217 = por %p215, %p216
      %p218 = scmp.ne.s32.totalorder %s210, %s212
      %p219 = scmp.eq.s32.totalorder %s24, 1
      %p220 = por %p218, %p219
      %p221 = scmp.ne.s32.totalorder %s212, %s213
      %p222 = scmp.eq.s32.totalorder %s24, 0
      %p223 = por %p221, %p222
      %p224 = scmp.ne.s32.totalorder %s212, %s213
      %p225 = scmp.eq.s32.totalorder %s25, 1
      %p226 = por %p224, %p225
      %p228 = scmp.ne.s32.totalorder %s213, %s227
      %p229 = scmp.eq.s32.totalorder %s25, 0
      %p230 = por %p228, %p229
      %s232 = sadd.s32 %s231, 1
      %p235 = scmp.eq.s32.totalorder %s19, 1
      %p236 = scmp.ne.s32.totalorder %s231, %s233
      %p237 = scmp.eq.s32.totalorder %s19, 0
      %p238 = por %p236, %p237
      %p239 = scmp.ne.s32.totalorder %s231, %s233
      %p240 = scmp.eq.s32.totalorder %s24, 1
      %p241 = por %p239, %p240
      %p242 = scmp.ne.s32.totalorder %s233, %s234
      %p243 = scmp.eq.s32.totalorder %s24, 0
      %p244 = por %p242, %p243
      %p245 = scmp.ne.s32.totalorder %s233, %s234
      %p246 = scmp.eq.s32.totalorder %s25, 1
      %p247 = por %p245, %p246
      %p249 = scmp.ne.s32.totalorder %s234, %s248
      %p250 = scmp.eq.s32.totalorder %s25, 0
      %p251 = por %p249, %p250
      %s252 = ssub.s32 %s19, %s26
      %p253 = scmp.eq.s32.totalorder %s252, 0
      %s255 = sadd.s32 %s254, 1
      %s256 = scalar_select %p253, %s254, %s255
      %p259 = pneg %p253
      %p260 = scmp.eq.s32.totalorder %s19, 1
      %p261 = por %p259, %p260
      %p262 = scmp.ne.s32.totalorder %s254, %s257
      %p263 = scmp.eq.s32.totalorder %s19, 0
      %p264 = por %p262, %p263
      %p265 = scmp.ne.s32.totalorder %s254, %s257
      %p266 = scmp.eq.s32.totalorder %s24, 1
      %p267 = por %p265, %p266
      %p268 = scmp.ne.s32.totalorder %s257, %s258
      %p269 = scmp.eq.s32.totalorder %s24, 0
      %p270 = por %p268, %p269
      %p271 = scmp.ne.s32.totalorder %s257, %s258
      %p272 = scmp.eq.s32.totalorder %s25, 1
      %p273 = por %p271, %p272
      %p275 = scmp.ne.s32.totalorder %s258, %s274
      %p276 = scmp.eq.s32.totalorder %s25, 0
      %p277 = por %p275, %p276
      %p278 = scmp.le.s32.totalorder 1, %s19
      %p279 = scmp.lt.s32.totalorder %s19, 3
      %p280 = pnand %p278, %p279
      %p281 = pneg %p280
      // Predicated region
      $region9: #{fofe_layer.1} parent=5 // pred_check
        _
      $region10: #{fofe_layer.1} parent=5 // pred_check_branch
        %283 = sbr.rel (%p280) target = $region12
      $region11: #{fofe_layer.1} parent=5 // pred_region
        %s284 = ssub.s32 %s19, 1
        // Predicated region
        $region13: #{fofe_layer.1} parent=11 // pred_check
          %p285 = pneg %p118
        $region14: #{fofe_layer.1} parent=11 // pred_check_branch
          %287 = sbr.rel (%p285) target = $region16
        $region15: #{fofe_layer.1} parent=11 // pred_region
          _
        $region16: #{fofe_layer.1} parent=11 // pred_fallthru
          _
        // Predicated region
        $region17: #{fofe_layer.1} parent=11 // pred_check
          %p288 = pneg %p139
        $region18: #{fofe_layer.1} parent=11 // pred_check_branch
          %290 = sbr.rel (%p288) target = $region20
        $region19: #{fofe_layer.1} parent=11 // pred_region
          _
        $region20: #{fofe_layer.1} parent=11 // pred_fallthru
          _
        // Predicated region
        $region21: #{fofe_layer.1} parent=11 // pred_check
          %p291 = pneg %p160
        $region22: #{fofe_layer.1} parent=11 // pred_check_branch
          %293 = sbr.rel (%p291) target = $region24
        $region23: #{fofe_layer.1} parent=11 // pred_region
          _
        $region24: #{fofe_layer.1} parent=11 // pred_fallthru
          _
        // Predicated region
        $region25: #{fofe_layer.1} parent=11 // pred_check
          %p294 = pneg %p181
        $region26: #{fofe_layer.1} parent=11 // pred_check_branch
          %296 = sbr.rel (%p294) target = $region28
        $region27: #{fofe_layer.1} parent=11 // pred_region
          _
        $region28: #{fofe_layer.1} parent=11 // pred_fallthru
          _
        // Predicated region
        $region29: #{fofe_layer.1} parent=11 // pred_check
          %p297 = pneg %p202
        $region30: #{fofe_layer.1} parent=11 // pred_check_branch
          %299 = sbr.rel (%p297) target = $region32
        $region31: #{fofe_layer.1} parent=11 // pred_region
          _
        $region32: #{fofe_layer.1} parent=11 // pred_fallthru
          _
        // Predicated region
        $region33: #{fofe_layer.1} parent=11 // pred_check
          %p300 = pneg %p223
        $region34: #{fofe_layer.1} parent=11 // pred_check_branch
          %302 = sbr.rel (%p300) target = $region36
        $region35: #{fofe_layer.1} parent=11 // pred_region
          _
        $region36: #{fofe_layer.1} parent=11 // pred_fallthru
          _
        // Predicated region
        $region37: #{fofe_layer.1} parent=11 // pred_check
          %p303 = pneg %p244
        $region38: #{fofe_layer.1} parent=11 // pred_check_branch
          %305 = sbr.rel (%p303) target = $region40
        $region39: #{fofe_layer.1} parent=11 // pred_region
          _
        $region40: #{fofe_layer.1} parent=11 // pred_fallthru
          _
      $region12: #{fofe_layer.1} parent=5 // pred_fallthru
        _
      %p306 = scmp.lt.s32.totalorder %s19, 2
      // Predicated region
      $region41: #{fofe_layer.1} parent=5 // pred_check
        %p307 = pneg %p306
      $region42: #{fofe_layer.1} parent=5 // pred_check_branch
        %309 = sbr.rel (%p307) target = $region44
      $region43: #{fofe_layer.1} parent=5 // pred_region
        // Predicated region
        $region45: #{fofe_layer.1} parent=43 // pred_check
          %p310 = pneg %p39
        $region46: #{fofe_layer.1} parent=43 // pred_check_branch
          %312 = sbr.rel (%p310) target = $region48
        $region47: #{fofe_layer.1} parent=43 // pred_region
          %p313 = scmp.lt.s32.totalorder %s19, 1
          %s314 = scalar_select %p313, %s19, 1
          %s315 = smul.addr %s314, 16
          %s316 = smul.addr %s315, 4
          %s317 = scalar_lea.vmem %s0, %s316
        $region48: #{fofe_layer.1} parent=43 // pred_fallthru
          _
        // Predicated region
        $region49: #{fofe_layer.1} parent=43 // pred_check
          %p318 = pneg %p65
        $region50: #{fofe_layer.1} parent=43 // pred_check_branch
          %320 = sbr.rel (%p318) target = $region52
        $region51: #{fofe_layer.1} parent=43 // pred_region
          %p321 = scmp.lt.s32.totalorder %s19, 1
          %s322 = scalar_select %p321, %s19, 1
          %s323 = smul.addr %s322, 8
          %s324 = smul.addr %s323, 8
          %s325 = scalar_lea.vmem %s1, %s324
        $region52: #{fofe_layer.1} parent=43 // pred_fallthru
          _
        // Predicated region
        $region53: #{fofe_layer.1} parent=43 // pred_check
          %p326 = pneg %p91
        $region54: #{fofe_layer.1} parent=43 // pred_check_branch
          %328 = sbr.rel (%p326) target = $region56
        $region55: #{fofe_layer.1} parent=43 // pred_region
          %p329 = scmp.lt.s32.totalorder %s19, 1
          %s330 = scalar_select %p329, %s19, 1
          %s331 = smul.addr %s330, 2
          %s332 = scalar_lea.vmem %s2, %s331
        $region56: #{fofe_layer.1} parent=43 // pred_fallthru
          _
      $region44: #{fofe_layer.1} parent=5 // pred_fallthru
        _
      %p333 = scmp.le.s32.totalorder 1, %s19
      %p334 = scmp.lt.s32.totalorder %s19, 3
      %p335 = pnand %p333, %p334
      %p336 = pneg %p335
      // Predicated region
      $region57: #{fofe_layer.1} parent=5 // pred_check
        _
      $region58: #{fofe_layer.1} parent=5 // pred_check_branch
        %338 = sbr.rel (%p335) target = $region60
      $region59: #{fofe_layer.1} parent=5 // pred_region
        %s339 = ssub.s32 %s19, 1
        %p340 = scmp.lt.s32.totalorder %s24, 1
        %s341 = scalar_select %p340, %s24, 1
        %s342 = smul.addr %s341, 16
        %s343 = smul.addr %s342, 4
        %s344 = scalar_lea.vmem %s0, %s343
        %p345 = pneg %p45
        %p346 = pneg %p42
        %p347 = scmp.lt.s32.totalorder %s24, 1
        %s348 = scalar_select %p347, %s24, 1
        %s349 = smul.addr %s348, 8
        %s350 = smul.addr %s349, 8
        %s351 = scalar_lea.vmem %s1, %s350
        %p352 = pneg %p71
        %p353 = pneg %p68
        %p354 = scmp.lt.s32.totalorder %s24, 1
        %s355 = scalar_select %p354, %s24, 1
        %s356 = smul.addr %s355, 2
        %s357 = scalar_lea.vmem %s2, %s356
        %p358 = pneg %p97
        %p359 = pneg %p94
        %p360 = pneg %p118
        %p361 = pneg %p115
        %p362 = pneg %p139
        %p363 = pneg %p136
        %p364 = pneg %p160
        %p365 = pneg %p157
        %p366 = pneg %p181
        %p367 = pneg %p178
        %p368 = pneg %p202
        %p369 = pneg %p199
        %p370 = pneg %p223
        %p371 = pneg %p220
        %p372 = pneg %p244
        %p373 = pneg %p241
        %p374 = pneg %p270
        %p375 = pneg %p267
        %s376 = sand.u32 %s257, 1
        %s377 = scalar_lea.sflag [#allocation3], %s376
        %s378 = sand.u32 %s257, 1
        %s379 = smul.addr %s378, 128
        %s380 = scalar_lea.vmem [#allocation2], %s379
        %p381 = scmp.lt.s32.totalorder %s24, 1
        %s382 = scalar_select %p381, %s24, 1
        %s383 = smul.addr %s382, 16
        %s384 = smul.addr %s383, 4
        %s385 = scalar_lea.vmem %s0, %s384
        %p386 = scmp.lt.s32.totalorder %s24, 1
        %s387 = scalar_select %p386, %s24, 1
        %s388 = smul.addr %s387, 8
        %s389 = smul.addr %s388, 8
        %s390 = scalar_lea.vmem %s1, %s389
        %p391 = scmp.lt.s32.totalorder %s24, 1
        %s392 = scalar_select %p391, %s24, 1
        %s393 = smul.addr %s392, 2
        %s394 = scalar_lea.vmem %s2, %s393
        %v396 = vld [vmem:[%s385] sm:$0xff]
        %v397 = vld [vmem:[%s385 + $0x8] sm:$0xff]
        %v398 = vld [vmem:[%s385 + $0x10] sm:$0xff]
        %v399 = vld [vmem:[%s385 + $0x18] sm:$0xff]
        %v400 = vld [vmem:[%s385 + $0x20] sm:$0xff]
        %v401 = vld [vmem:[%s385 + $0x28] sm:$0xff]
        %v402 = vld [vmem:[%s385 + $0x30] sm:$0xff]
        %v403 = vld [vmem:[%s385 + $0x38] sm:$0xff]
        %v404 = vld [vmem:[%s5] sm:$0xf]
        %v405 = vld [vmem:[%s5 + $0x4] sm:$0xf]
        %v406 = vld [vmem:[%s5 + $0x8] sm:$0xf]
        %v407 = vld [vmem:[%s5 + $0xc] sm:$0xf]
        %v408 = vld [vmem:[%s5 + $0x10] sm:$0xf]
        %v409 = vld [vmem:[%s5 + $0x14] sm:$0xf]
        %v410 = vld [vmem:[%s5 + $0x18] sm:$0xf]
        %v411 = vld [vmem:[%s5 + $0x1c] sm:$0xf]
        %v412 = vld [vmem:[%s5 + $0x20] sm:$0xf]
        %v413 = vld [vmem:[%s5 + $0x24] sm:$0xf]
        %v414 = vld [vmem:[%s5 + $0x28] sm:$0xf]
        %v415 = vld [vmem:[%s5 + $0x2c] sm:$0xf]
        %v416 = vld [vmem:[%s5 + $0x30] sm:$0xf]
        %v417 = vld [vmem:[%s5 + $0x34] sm:$0xf]
        %v418 = vld [vmem:[%s5 + $0x38] sm:$0xf]
        %v419 = vld [vmem:[%s5 + $0x3c] sm:$0xf]
        %v420 = vld [vmem:[%s5 + $0x40] sm:$0xf]
        %v421 = vld [vmem:[%s5 + $0x44] sm:$0xf]
        %v422 = vld [vmem:[%s5 + $0x48] sm:$0xf]
        %v423 = vld [vmem:[%s5 + $0x4c] sm:$0xf]
        %v424 = vld [vmem:[%s5 + $0x50] sm:$0xf]
        %v425 = vld [vmem:[%s5 + $0x54] sm:$0xf]
        %v426 = vld [vmem:[%s5 + $0x58] sm:$0xf]
        %v427 = vld [vmem:[%s5 + $0x5c] sm:$0xf]
        %v428 = vld [vmem:[%s5 + $0x60] sm:$0xf]
        %v429 = vld [vmem:[%s5 + $0x64] sm:$0xf]
        %v430 = vld [vmem:[%s5 + $0x68] sm:$0xf]
        %v431 = vld [vmem:[%s5 + $0x6c] sm:$0xf]
        %v432 = vld [vmem:[%s5 + $0x70] sm:$0xf]
        %v433 = vld [vmem:[%s5 + $0x74] sm:$0xf]
        %v434 = vld [vmem:[%s5 + $0x78] sm:$0xf]
        %v435 = vld [vmem:[%s5 + $0x7c] sm:$0xf]
        %v436 = vld [vmem:[%s6] sm:$0x1]
        %v438 = vlaneseq
        %v439 = vshrl.u32 %v438, 7
        %v440 = vsub.s32 0, %v439
        %v441 = vrot.slane %v436, %v440
        %v451 = vunpack.c.l.b16 %v396
        %v452 = vunpack.c.h.b16 %v396
        %v453 = vunpack.c.l.b16 %v397
        %v454 = vunpack.c.h.b16 %v397
        %v455 = vunpack.c.l.b16 %v398
        %v456 = vunpack.c.h.b16 %v398
        %v457 = vunpack.c.l.b16 %v399
        %v458 = vunpack.c.h.b16 %v399
        %v459 = vunpack.c.l.b16 %v400
        %v460 = vunpack.c.h.b16 %v400
        %v461 = vunpack.c.l.b16 %v401
        %v462 = vunpack.c.h.b16 %v401
        %v463 = vunpack.c.l.b16 %v402
        %v464 = vunpack.c.h.b16 %v402
        %v465 = vunpack.c.l.b16 %v403
        %v466 = vunpack.c.h.b16 %v403
        %v467 = vpack.c.b16 %v453, %v451
        %v468 = vpack.c.b16 %v454, %v452
        %v469 = vpack.c.b16 %v457, %v455
        %v470 = vpack.c.b16 %v458, %v456
        %v471 = vpack.c.b16 %v461, %v459
        %v472 = vpack.c.b16 %v462, %v460
        %v473 = vpack.c.b16 %v465, %v463
        %v474 = vpack.c.b16 %v466, %v464
        %v515 = vunpack.c.l.b16 %v404
        %v516 = vunpack.c.l.b16 %v405
        %v517 = vunpack.c.l.b16 %v406
        %v518 = vunpack.c.l.b16 %v407
        %v519 = vunpack.c.l.b16 %v408
        %v520 = vunpack.c.l.b16 %v409
        %v521 = vunpack.c.l.b16 %v410
        %v522 = vunpack.c.l.b16 %v411
        %v523 = vunpack.c.l.b16 %v412
        %v524 = vunpack.c.l.b16 %v413
        %v525 = vunpack.c.l.b16 %v414
        %v526 = vunpack.c.l.b16 %v415
        %v527 = vunpack.c.l.b16 %v416
        %v528 = vunpack.c.l.b16 %v417
        %v529 = vunpack.c.l.b16 %v418
        %v530 = vunpack.c.l.b16 %v419
        %v531 = vunpack.c.l.b16 %v420
        %v532 = vunpack.c.l.b16 %v421
        %v533 = vunpack.c.l.b16 %v422
        %v534 = vunpack.c.l.b16 %v423
        %v535 = vunpack.c.l.b16 %v424
        %v536 = vunpack.c.l.b16 %v425
        %v537 = vunpack.c.l.b16 %v426
        %v538 = vunpack.c.l.b16 %v427
        %v539 = vunpack.c.l.b16 %v428
        %v540 = vunpack.c.l.b16 %v429
        %v541 = vunpack.c.l.b16 %v430
        %v542 = vunpack.c.l.b16 %v431
        %v543 = vunpack.c.l.b16 %v432
        %v544 = vunpack.c.l.b16 %v433
        %v545 = vunpack.c.l.b16 %v434
        %v546 = vunpack.c.l.b16 %v435
        %v547 = vpack.c.b16 %v516, %v515
        %v548 = vpack.c.b16 %v518, %v517
        %v549 = vpack.c.b16 %v520, %v519
        %v550 = vpack.c.b16 %v522, %v521
        %v551 = vpack.c.b16 %v524, %v523
        %v552 = vpack.c.b16 %v526, %v525
        %v553 = vpack.c.b16 %v528, %v527
        %v554 = vpack.c.b16 %v530, %v529
        %v555 = vpack.c.b16 %v532, %v531
        %v556 = vpack.c.b16 %v534, %v533
        %v557 = vpack.c.b16 %v536, %v535
        %v558 = vpack.c.b16 %v538, %v537
        %v559 = vpack.c.b16 %v540, %v539
        %v560 = vpack.c.b16 %v542, %v541
        %v561 = vpack.c.b16 %v544, %v543
        %v562 = vpack.c.b16 %v546, %v545
        %579 = vmatprep.subr.bf16.mxu0 0
        %580 = vmatpush1.bf16.msra.mxu0 %v554
        %581 = vmatprep.subr.bf16.mxu0 0
        %582 = vmatpush1.bf16.msra.mxu0 %v553
        %583 = vmatprep.subr.bf16.mxu0 0
        %584 = vmatpush1.bf16.msra.mxu0 %v552
        %585 = vmatprep.subr.bf16.mxu0 0
        %586 = vmatpush1.bf16.msra.mxu0 %v551
        %587 = vmatprep.subr.bf16.mxu0 0
        %588 = vmatpush1.bf16.msra.mxu0 %v550
        %589 = vmatprep.subr.bf16.mxu0 0
        %590 = vmatpush1.bf16.msra.mxu0 %v549
        %591 = vmatprep.subr.bf16.mxu0 0
        %592 = vmatpush1.bf16.msra.mxu0 %v548
        %593 = vmatprep.subr.bf16.mxu0 0
        %594 = vmatpush1.bf16.msra.mxu0 %v547
        %595 = vmatprep.subr.bf16.mxu0 0
        %596 = vmatpush2.bf16.msra.mxu0 %v562
        %597 = vmatprep.subr.bf16.mxu0 0
        %598 = vmatpush2.bf16.msra.mxu0 %v561
        %599 = vmatprep.subr.bf16.mxu0 0
        %600 = vmatpush2.bf16.msra.mxu0 %v560
        %601 = vmatprep.subr.bf16.mxu0 0
        %602 = vmatpush2.bf16.msra.mxu0 %v559
        %603 = vmatprep.subr.bf16.mxu0 0
        %604 = vmatpush2.bf16.msra.mxu0 %v558
        %605 = vmatprep.subr.bf16.mxu0 0
        %606 = vmatpush2.bf16.msra.mxu0 %v557
        %607 = vmatprep.subr.bf16.mxu0 0
        %608 = vmatpush2.bf16.msra.mxu0 %v556
        %609 = vmatprep.subr.bf16.mxu0 0
        %610 = vmatpush2.bf16.msra.mxu0 %v555
        %611 = vmatprep.mubr.bf16.mxu0 %v468
        %612 = vmatmul.mubr.bf16.gmra.mxu0 %v467
        %v613 = vpop.f32.mrf.mxu0
        %v614 = vadd.f32 %v441, %v613
        %v615 = vpop.f32.mrf.mxu0
        %v616 = vpop.f32.mrf.mxu0
        %v617 = vadd.f32 %v441, %v616
        %v618 = vpop.f32.mrf.mxu0
        %619 = vmatprep.mubr.bf16.mxu0 %v470
        %620 = vmatmul.mubr.bf16.gmra.mxu0 %v469
        %v621 = vpop.f32.mrf.mxu0
        %v622 = vadd.f32 %v441, %v621
        %v623 = vpop.f32.mrf.mxu0
        %v624 = vpop.f32.mrf.mxu0
        %v625 = vadd.f32 %v441, %v624
        %v626 = vpop.f32.mrf.mxu0
        %627 = vmatprep.mubr.bf16.mxu0 %v472
        %628 = vmatmul.mubr.bf16.gmra.mxu0 %v471
        %v629 = vpop.f32.mrf.mxu0
        %v630 = vadd.f32 %v441, %v629
        %v631 = vpop.f32.mrf.mxu0
        %v632 = vpop.f32.mrf.mxu0
        %v633 = vadd.f32 %v441, %v632
        %v634 = vpop.f32.mrf.mxu0
        %635 = vmatprep.mubr.bf16.mxu0 %v474
        %636 = vmatmul.mubr.bf16.gmra.mxu0 %v473
        %v637 = vpop.f32.mrf.mxu0
        %v638 = vadd.f32 %v441, %v637
        %v639 = vpop.f32.mrf.mxu0
        %v640 = vpop.f32.mrf.mxu0
        %v641 = vadd.f32 %v441, %v640
        %v642 = vpop.f32.mrf.mxu0
        %643 = vdwg.mxu0
        %v644 = vmax.f32 %v614, 0.0
        %v645 = vmax.f32 %v617, 0.0
        %v646 = vmax.f32 %v622, 0.0
        %v647 = vmax.f32 %v625, 0.0
        %v648 = vmax.f32 %v630, 0.0
        %v649 = vmax.f32 %v633, 0.0
        %v650 = vmax.f32 %v638, 0.0
        %v651 = vmax.f32 %v641, 0.0
        %v652 = vpack.c.bf16 %v645, %v644
        %v653 = vpack.c.bf16 %v647, %v646
        %v654 = vpack.c.bf16 %v649, %v648
        %v655 = vpack.c.bf16 %v651, %v650
        %v656 = vlaneseq
        %v657 = vand.u32 %v656, 127
        %v658 = vlaneseq
        %v659 = vshrl.u32 %v658, 7
        %v660 = vadd.s32 %v659, 8
        %v661 = vadd.s32 %v659, 16
        %v662 = vadd.s32 %v659, 24
        %v663 = vadd.s32 %v659, 32
        %v664 = vadd.s32 %v659, 40
        %v665 = vadd.s32 %v659, 48
        %v666 = vadd.s32 %v659, 56
        %v667 = vld [vmem:[%s3] sm:$0xf]
        %v668 = vld [vmem:[%s3 + $0x4] sm:$0xf]
        %v669 = vld [vmem:[%s3 + $0x8] sm:$0xf]
        %v670 = vld [vmem:[%s3 + $0xc] sm:$0xf]
        %v671 = vld [vmem:[%s3 + $0x10] sm:$0xf]
        %v672 = vld [vmem:[%s3 + $0x14] sm:$0xf]
        %v673 = vld [vmem:[%s3 + $0x18] sm:$0xf]
        %v674 = vld [vmem:[%s3 + $0x1c] sm:$0xf]
        %v675 = vld [vmem:[%s4] sm:$0xf]
        %v676 = vld [vmem:[%s4 + $0x4] sm:$0xf]
        %v677 = vld [vmem:[%s4 + $0x8] sm:$0xf]
        %v678 = vld [vmem:[%s4 + $0xc] sm:$0xf]
        %v679 = vld [vmem:[%s4 + $0x10] sm:$0xf]
        %v680 = vld [vmem:[%s4 + $0x14] sm:$0xf]
        %v681 = vld [vmem:[%s4 + $0x18] sm:$0xf]
        %v682 = vld [vmem:[%s4 + $0x1c] sm:$0xf]
        %v683 = vld [vmem:[%s390] sm:$0xff]
        %v684 = vld [vmem:[%s390 + $0x8] sm:$0xff]
        %v685 = vld [vmem:[%s390 + $0x10] sm:$0xff]
        %v686 = vld [vmem:[%s390 + $0x18] sm:$0xff]
        %v687 = vld [vmem:[%s390 + $0x20] sm:$0xff]
        %v688 = vld [vmem:[%s390 + $0x28] sm:$0xff]
        %v689 = vld [vmem:[%s390 + $0x30] sm:$0xff]
        %v690 = vld [vmem:[%s390 + $0x38] sm:$0xff]
        %691 = vset.pattern.permute.xlu0 0
        %692 = vperm.xlu0 %691, %v683
        %v693 = vpop.permute.xlu0 %692
        %694 = vset.pattern.permute.xlu0 0
        %695 = vperm.xlu0 %694, %v684
        %v696 = vpop.permute.xlu0 %695
        %697 = vset.pattern.permute.xlu0 0
        %698 = vperm.xlu0 %697, %v685
        %v699 = vpop.permute.xlu0 %698
        %700 = vset.pattern.permute.xlu0 0
        %701 = vperm.xlu0 %700, %v686
        %v702 = vpop.permute.xlu0 %701
        %703 = vset.pattern.permute.xlu0 0
        %704 = vperm.xlu0 %703, %v687
        %v705 = vpop.permute.xlu0 %704
        %706 = vset.pattern.permute.xlu0 0
        %707 = vperm.xlu0 %706, %v688
        %v708 = vpop.permute.xlu0 %707
        %709 = vset.pattern.permute.xlu0 0
        %710 = vperm.xlu0 %709, %v689
        %v711 = vpop.permute.xlu0 %710
        %712 = vset.pattern.permute.xlu0 0
        %713 = vperm.xlu0 %712, %v690
        %v714 = vpop.permute.xlu0 %713
        %vm715 = vcmp.ge.s32.totalorder %v657, %v693
        %vm716 = vcmp.ge.s32.totalorder %v657, %v696
        %vm717 = vcmp.ge.s32.totalorder %v657, %v699
        %vm718 = vcmp.ge.s32.totalorder %v657, %v702
        %vm719 = vcmp.ge.s32.totalorder %v657, %v705
        %vm720 = vcmp.ge.s32.totalorder %v657, %v708
        %vm721 = vcmp.ge.s32.totalorder %v657, %v711
        %vm722 = vcmp.ge.s32.totalorder %v657, %v714
        %723 = vset.pattern.permute.xlu0 1
        %724 = vperm.xlu0 %723, %v683
        %v725 = vpop.permute.xlu0 %724
        %726 = vset.pattern.permute.xlu0 1
        %727 = vperm.xlu0 %726, %v684
        %v728 = vpop.permute.xlu0 %727
        %729 = vset.pattern.permute.xlu0 1
        %730 = vperm.xlu0 %729, %v685
        %v731 = vpop.permute.xlu0 %730
        %732 = vset.pattern.permute.xlu0 1
        %733 = vperm.xlu0 %732, %v686
        %v734 = vpop.permute.xlu0 %733
        %735 = vset.pattern.permute.xlu0 1
        %736 = vperm.xlu0 %735, %v687
        %v737 = vpop.permute.xlu0 %736
        %738 = vset.pattern.permute.xlu0 1
        %739 = vperm.xlu0 %738, %v688
        %v740 = vpop.permute.xlu0 %739
        %741 = vset.pattern.permute.xlu0 1
        %742 = vperm.xlu0 %741, %v689
        %v743 = vpop.permute.xlu0 %742
        %744 = vset.pattern.permute.xlu0 1
        %745 = vperm.xlu0 %744, %v690
        %v746 = vpop.permute.xlu0 %745
        %vm747 = vcmp.lt.s32.totalorder %v657, %v725
        %vm748 = vcmp.lt.s32.totalorder %v657, %v728
        %vm749 = vcmp.lt.s32.totalorder %v657, %v731
        %vm750 = vcmp.lt.s32.totalorder %v657, %v734
        %vm751 = vcmp.lt.s32.totalorder %v657, %v737
        %vm752 = vcmp.lt.s32.totalorder %v657, %v740
        %vm753 = vcmp.lt.s32.totalorder %v657, %v743
        %vm754 = vcmp.lt.s32.totalorder %v657, %v746
        %vm755 = vmand %vm715, %vm747
        %vm756 = vmand %vm716, %vm748
        %vm757 = vmand %vm717, %vm749
        %vm758 = vmand %vm718, %vm750
        %vm759 = vmand %vm719, %vm751
        %vm760 = vmand %vm720, %vm752
        %vm761 = vmand %vm721, %vm753
        %vm762 = vmand %vm722, %vm754
        %vm763 = vmpackc.low %vm755, %vm755
        %vm764 = vmpackc.low %vm756, %vm756
        %vm765 = vmpackc.low %vm757, %vm757
        %vm766 = vmpackc.low %vm758, %vm758
        %vm767 = vmpackc.low %vm759, %vm759
        %vm768 = vmpackc.low %vm760, %vm760
        %vm769 = vmpackc.low %vm761, %vm761
        %vm770 = vmpackc.low %vm762, %vm762
        %v771 = vsel %vm763, %v667, 0
        %v772 = vsel %vm764, %v668, 0
        %v773 = vsel %vm765, %v669, 0
        %v774 = vsel %vm766, %v670, 0
        %v775 = vsel %vm767, %v671, 0
        %v776 = vsel %vm768, %v672, 0
        %v777 = vsel %vm769, %v673, 0
        %v778 = vsel %vm770, %v674, 0
        %v779 = vld [vmem:[%s394] sm:$0x3]
        %v780 = vlaneseq
        %v781 = vshrl.u32 %v780, 7
        %v782 = vsub.s32 0, %v781
        %v783 = vrot.slane %v779, %v782
        %vm784 = vcmp.ge.s32.totalorder %v659, %v783
        %vm785 = vcmp.ge.s32.totalorder %v660, %v783
        %vm786 = vcmp.ge.s32.totalorder %v661, %v783
        %vm787 = vcmp.ge.s32.totalorder %v662, %v783
        %vm788 = vcmp.ge.s32.totalorder %v663, %v783
        %vm789 = vcmp.ge.s32.totalorder %v664, %v783
        %vm790 = vcmp.ge.s32.totalorder %v665, %v783
        %vm791 = vcmp.ge.s32.totalorder %v666, %v783
        %v792 = vlaneseq
        %v793 = vshrl.u32 %v792, 7
        %v794 = vsub.s32 1, %v793
        %v795 = vrot.slane %v779, %v794
        %vm796 = vcmp.lt.s32.totalorder %v659, %v795
        %vm797 = vcmp.lt.s32.totalorder %v660, %v795
        %vm798 = vcmp.lt.s32.totalorder %v661, %v795
        %vm799 = vcmp.lt.s32.totalorder %v662, %v795
        %vm800 = vcmp.lt.s32.totalorder %v663, %v795
        %vm801 = vcmp.lt.s32.totalorder %v664, %v795
        %vm802 = vcmp.lt.s32.totalorder %v665, %v795
        %vm803 = vcmp.lt.s32.totalorder %v666, %v795
        %vm804 = vmand %vm784, %vm796
        %vm805 = vmand %vm785, %vm797
        %vm806 = vmand %vm786, %vm798
        %vm807 = vmand %vm787, %vm799
        %vm808 = vmand %vm788, %vm800
        %vm809 = vmand %vm789, %vm801
        %vm810 = vmand %vm790, %vm802
        %vm811 = vmand %vm791, %vm803
        %vm812 = vmpackc.low %vm804, %vm804
        %vm813 = vmpackc.low %vm805, %vm805
        %vm814 = vmpackc.low %vm806, %vm806
        %vm815 = vmpackc.low %vm807, %vm807
        %vm816 = vmpackc.low %vm808, %vm808
        %vm817 = vmpackc.low %vm809, %vm809
        %vm818 = vmpackc.low %vm810, %vm810
        %vm819 = vmpackc.low %vm811, %vm811
        %v820 = vsel %vm812, %v675, 0
        %v821 = vsel %vm813, %v676, 0
        %v822 = vsel %vm814, %v677, 0
        %v823 = vsel %vm815, %v678, 0
        %v824 = vsel %vm816, %v679, 0
        %v825 = vsel %vm817, %v680, 0
        %v826 = vsel %vm818, %v681, 0
        %v827 = vsel %vm819, %v682, 0
        %v836 = vunpack.c.l.b16 %v771
        %v837 = vunpack.c.l.b16 %v772
        %v838 = vunpack.c.l.b16 %v773
        %v839 = vunpack.c.l.b16 %v774
        %v840 = vunpack.c.l.b16 %v775
        %v841 = vunpack.c.l.b16 %v776
        %v842 = vunpack.c.l.b16 %v777
        %v843 = vunpack.c.l.b16 %v778
        %v844 = vpack.c.b16 %v837, %v836
        %v845 = vpack.c.b16 %v839, %v838
        %v846 = vpack.c.b16 %v841, %v840
        %v847 = vpack.c.b16 %v843, %v842
        %vm848 = vcmask 523264
        %v850 = vsel %vm848, %v844, 0
        %v853 = vsel %vm848, %v845, 0
        %v856 = vsel %vm848, %v846, 0
        %v859 = vsel %vm848, %v847, 0
        %861 = vmatprep.subr.bf16.mxu0 0
        %862 = vmatpush1.bf16.msra.mxu0 0
        %863 = vmatprep.subr.bf16.mxu0 0
        %864 = vmatpush1.bf16.msra.mxu0 0
        %865 = vmatprep.subr.bf16.mxu0 0
        %866 = vmatpush1.bf16.msra.mxu0 0
        %867 = vmatprep.subr.bf16.mxu0 0
        %868 = vmatpush1.bf16.msra.mxu0 0
        %869 = vmatprep.subr.bf16.mxu0 0
        %870 = vmatpush1.bf16.msra.mxu0 %v655
        %871 = vmatprep.subr.bf16.mxu0 0
        %872 = vmatpush1.bf16.msra.mxu0 %v654
        %873 = vmatprep.subr.bf16.mxu0 0
        %874 = vmatpush1.bf16.msra.mxu0 %v653
        %875 = vmatprep.subr.bf16.mxu0 0
        %876 = vmatpush1.bf16.msra.mxu0 %v652
        %877 = vmatprep.subr.bf16.mxu0 0
        %878 = vmatpush2.bf16.msra.mxu0 0
        %879 = vmatprep.subr.bf16.mxu0 0
        %880 = vmatpush2.bf16.msra.mxu0 0
        %881 = vmatprep.subr.bf16.mxu0 0
        %882 = vmatpush2.bf16.msra.mxu0 0
        %883 = vmatprep.subr.bf16.mxu0 0
        %884 = vmatpush2.bf16.msra.mxu0 0
        %885 = vmatprep.subr.bf16.mxu0 0
        %886 = vmatpush2.bf16.msra.mxu0 0
        %887 = vmatprep.subr.bf16.mxu0 0
        %888 = vmatpush2.bf16.msra.mxu0 0
        %889 = vmatprep.subr.bf16.mxu0 0
        %890 = vmatpush2.bf16.msra.mxu0 0
        %891 = vmatprep.subr.bf16.mxu0 0
        %892 = vmatpush2.bf16.msra.mxu0 0
        %893 = vmatprep.mubr.bf16.mxu0 0
        %894 = vmatmul.mubr.bf16.gmra.mxu0 %v850
        %v895 = vpop.f32.mrf.mxu0
        %v896 = vadd.f32 0.0, %v895
        %v897 = vpop.f32.mrf.mxu0
        %v898 = vpop.f32.mrf.mxu0
        %v899 = vadd.f32 0.0, %v898
        %v900 = vpop.f32.mrf.mxu0
        %901 = vmatprep.mubr.bf16.mxu0 0
        %902 = vmatmul.mubr.bf16.gmra.mxu0 %v853
        %v903 = vpop.f32.mrf.mxu0
        %v904 = vadd.f32 0.0, %v903
        %v905 = vpop.f32.mrf.mxu0
        %v906 = vpop.f32.mrf.mxu0
        %v907 = vadd.f32 0.0, %v906
        %v908 = vpop.f32.mrf.mxu0
        %909 = vmatprep.mubr.bf16.mxu0 0
        %910 = vmatmul.mubr.bf16.gmra.mxu0 %v856
        %v911 = vpop.f32.mrf.mxu0
        %v912 = vadd.f32 0.0, %v911
        %v913 = vpop.f32.mrf.mxu0
        %v914 = vpop.f32.mrf.mxu0
        %v915 = vadd.f32 0.0, %v914
        %v916 = vpop.f32.mrf.mxu0
        %917 = vmatprep.mubr.bf16.mxu0 0
        %918 = vmatmul.mubr.bf16.gmra.mxu0 %v859
        %v919 = vpop.f32.mrf.mxu0
        %v920 = vadd.f32 0.0, %v919
        %v921 = vpop.f32.mrf.mxu0
        %v922 = vpop.f32.mrf.mxu0
        %v923 = vadd.f32 0.0, %v922
        %v924 = vpop.f32.mrf.mxu0
        %925 = vdwg.mxu0
        %v934 = vunpack.c.l.b16 %v820
        %v935 = vunpack.c.l.b16 %v821
        %v936 = vunpack.c.l.b16 %v822
        %v937 = vunpack.c.l.b16 %v823
        %v938 = vunpack.c.l.b16 %v824
        %v939 = vunpack.c.l.b16 %v825
        %v940 = vunpack.c.l.b16 %v826
        %v941 = vunpack.c.l.b16 %v827
        %v942 = vpack.c.b16 %v935, %v934
        %v943 = vpack.c.b16 %v937, %v936
        %v944 = vpack.c.b16 %v939, %v938
        %v945 = vpack.c.b16 %v941, %v940
        %v947 = vsel %vm848, %v942, 0
        %v950 = vsel %vm848, %v943, 0
        %v953 = vsel %vm848, %v944, 0
        %v956 = vsel %vm848, %v945, 0
        %958 = vmatprep.subr.bf16.mxu0 0
        %959 = vmatpush1.bf16.msra.mxu0 0
        %960 = vmatprep.subr.bf16.mxu0 0
        %961 = vmatpush1.bf16.msra.mxu0 0
        %962 = vmatprep.subr.bf16.mxu0 0
        %963 = vmatpush1.bf16.msra.mxu0 0
        %964 = vmatprep.subr.bf16.mxu0 0
        %965 = vmatpush1.bf16.msra.mxu0 0
        %966 = vmatprep.subr.bf16.mxu0 0
        %967 = vmatpush1.bf16.msra.mxu0 %v655
        %968 = vmatprep.subr.bf16.mxu0 0
        %969 = vmatpush1.bf16.msra.mxu0 %v654
        %970 = vmatprep.subr.bf16.mxu0 0
        %971 = vmatpush1.bf16.msra.mxu0 %v653
        %972 = vmatprep.subr.bf16.mxu0 0
        %973 = vmatpush1.bf16.msra.mxu0 %v652
        %974 = vmatprep.subr.bf16.mxu0 0
        %975 = vmatpush2.bf16.msra.mxu0 0
        %976 = vmatprep.subr.bf16.mxu0 0
        %977 = vmatpush2.bf16.msra.mxu0 0
        %978 = vmatprep.subr.bf16.mxu0 0
        %979 = vmatpush2.bf16.msra.mxu0 0
        %980 = vmatprep.subr.bf16.mxu0 0
        %981 = vmatpush2.bf16.msra.mxu0 0
        %982 = vmatprep.subr.bf16.mxu0 0
        %983 = vmatpush2.bf16.msra.mxu0 0
        %984 = vmatprep.subr.bf16.mxu0 0
        %985 = vmatpush2.bf16.msra.mxu0 0
        %986 = vmatprep.subr.bf16.mxu0 0
        %987 = vmatpush2.bf16.msra.mxu0 0
        %988 = vmatprep.subr.bf16.mxu0 0
        %989 = vmatpush2.bf16.msra.mxu0 0
        %990 = vmatprep.mubr.bf16.mxu0 0
        %991 = vmatmul.mubr.bf16.gmra.mxu0 %v947
        %v992 = vpop.f32.mrf.mxu0
        %v993 = vadd.f32 0.0, %v992
        %v994 = vpop.f32.mrf.mxu0
        %v995 = vpop.f32.mrf.mxu0
        %v996 = vadd.f32 0.0, %v995
        %v997 = vpop.f32.mrf.mxu0
        %998 = vmatprep.mubr.bf16.mxu0 0
        %999 = vmatmul.mubr.bf16.gmra.mxu0 %v950
        %v1000 = vpop.f32.mrf.mxu0
        %v1001 = vadd.f32 0.0, %v1000
        %v1002 = vpop.f32.mrf.mxu0
        %v1003 = vpop.f32.mrf.mxu0
        %v1004 = vadd.f32 0.0, %v1003
        %v1005 = vpop.f32.mrf.mxu0
        %1006 = vmatprep.mubr.bf16.mxu0 0
        %1007 = vmatmul.mubr.bf16.gmra.mxu0 %v953
        %v1008 = vpop.f32.mrf.mxu0
        %v1009 = vadd.f32 0.0, %v1008
        %v1010 = vpop.f32.mrf.mxu0
        %v1011 = vpop.f32.mrf.mxu0
        %v1012 = vadd.f32 0.0, %v1011
        %v1013 = vpop.f32.mrf.mxu0
        %1014 = vmatprep.mubr.bf16.mxu0 0
        %1015 = vmatmul.mubr.bf16.gmra.mxu0 %v956
        %v1016 = vpop.f32.mrf.mxu0
        %v1017 = vadd.f32 0.0, %v1016
        %v1018 = vpop.f32.mrf.mxu0
        %v1019 = vpop.f32.mrf.mxu0
        %v1020 = vadd.f32 0.0, %v1019
        %v1021 = vpop.f32.mrf.mxu0
        %1022 = vdwg.mxu0
        %v1023 = vpack.c.bf16 %v899, %v896
        %v1024 = vpack.c.bf16 %v907, %v904
        %v1025 = vpack.c.bf16 %v915, %v912
        %v1026 = vpack.c.bf16 %v923, %v920
        %v1027 = vld [vmem:[%s7] sm:$0xff]
        %v1028 = vld [vmem:[%s7 + $0x8] sm:$0xff]
        %v1029 = vld [vmem:[%s7 + $0x10] sm:$0xff]
        %v1030 = vld [vmem:[%s7 + $0x18] sm:$0xff]
        %v1031 = vld [vmem:[%s7 + $0x20] sm:$0xff]
        %v1032 = vld [vmem:[%s7 + $0x28] sm:$0xff]
        %v1033 = vld [vmem:[%s7 + $0x30] sm:$0xff]
        %v1034 = vld [vmem:[%s7 + $0x38] sm:$0xff]
        %v1035 = vld [vmem:[%s7 + $0x40] sm:$0xff]
        %v1036 = vld [vmem:[%s7 + $0x48] sm:$0xff]
        %v1037 = vld [vmem:[%s7 + $0x50] sm:$0xff]
        %v1038 = vld [vmem:[%s7 + $0x58] sm:$0xff]
        %v1039 = vld [vmem:[%s7 + $0x60] sm:$0xff]
        %v1040 = vld [vmem:[%s7 + $0x68] sm:$0xff]
        %v1041 = vld [vmem:[%s7 + $0x70] sm:$0xff]
        %v1042 = vld [vmem:[%s7 + $0x78] sm:$0xff]
        %v1043 = vpack.c.bf16 %v996, %v993
        %v1044 = vpack.c.bf16 %v1004, %v1001
        %v1045 = vpack.c.bf16 %v1012, %v1009
        %v1046 = vpack.c.bf16 %v1020, %v1017
        %v1047 = vld [vmem:[%s8] sm:$0xff]
        %v1048 = vld [vmem:[%s8 + $0x8] sm:$0xff]
        %v1049 = vld [vmem:[%s8 + $0x10] sm:$0xff]
        %v1050 = vld [vmem:[%s8 + $0x18] sm:$0xff]
        %v1051 = vld [vmem:[%s8 + $0x20] sm:$0xff]
        %v1052 = vld [vmem:[%s8 + $0x28] sm:$0xff]
        %v1053 = vld [vmem:[%s8 + $0x30] sm:$0xff]
        %v1054 = vld [vmem:[%s8 + $0x38] sm:$0xff]
        %v1055 = vld [vmem:[%s8 + $0x40] sm:$0xff]
        %v1056 = vld [vmem:[%s8 + $0x48] sm:$0xff]
        %v1057 = vld [vmem:[%s8 + $0x50] sm:$0xff]
        %v1058 = vld [vmem:[%s8 + $0x58] sm:$0xff]
        %v1059 = vld [vmem:[%s8 + $0x60] sm:$0xff]
        %v1060 = vld [vmem:[%s8 + $0x68] sm:$0xff]
        %v1061 = vld [vmem:[%s8 + $0x70] sm:$0xff]
        %v1062 = vld [vmem:[%s8 + $0x78] sm:$0xff]
        %v1079 = vunpack.c.l.b16 %v1047
        %v1080 = vunpack.c.h.b16 %v1047
        %v1081 = vunpack.c.l.b16 %v1048
        %v1082 = vunpack.c.h.b16 %v1048
        %v1083 = vunpack.c.l.b16 %v1049
        %v1084 = vunpack.c.h.b16 %v1049
        %v1085 = vunpack.c.l.b16 %v1050
        %v1086 = vunpack.c.h.b16 %v1050
        %v1087 = vunpack.c.l.b16 %v1051
        %v1088 = vunpack.c.h.b16 %v1051
        %v1089 = vunpack.c.l.b16 %v1052
        %v1090 = vunpack.c.h.b16 %v1052
        %v1091 = vunpack.c.l.b16 %v1053
        %v1092 = vunpack.c.h.b16 %v1053
        %v1093 = vunpack.c.l.b16 %v1054
        %v1094 = vunpack.c.h.b16 %v1054
        %v1095 = vunpack.c.l.b16 %v1055
        %v1096 = vunpack.c.h.b16 %v1055
        %v1097 = vunpack.c.l.b16 %v1056
        %v1098 = vunpack.c.h.b16 %v1056
        %v1099 = vunpack.c.l.b16 %v1057
        %v1100 = vunpack.c.h.b16 %v1057
        %v1101 = vunpack.c.l.b16 %v1058
        %v1102 = vunpack.c.h.b16 %v1058
        %v1103 = vunpack.c.l.b16 %v1059
        %v1104 = vunpack.c.h.b16 %v1059
        %v1105 = vunpack.c.l.b16 %v1060
        %v1106 = vunpack.c.h.b16 %v1060
        %v1107 = vunpack.c.l.b16 %v1061
        %v1108 = vunpack.c.h.b16 %v1061
        %v1109 = vunpack.c.l.b16 %v1062
        %v1110 = vunpack.c.h.b16 %v1062
        %v1111 = vpack.c.b16 %v1081, %v1079
        %v1112 = vpack.c.b16 %v1082, %v1080
        %v1113 = vpack.c.b16 %v1085, %v1083
        %v1114 = vpack.c.b16 %v1086, %v1084
        %v1115 = vpack.c.b16 %v1089, %v1087
        %v1116 = vpack.c.b16 %v1090, %v1088
        %v1117 = vpack.c.b16 %v1093, %v1091
        %v1118 = vpack.c.b16 %v1094, %v1092
        %v1119 = vpack.c.b16 %v1097, %v1095
        %v1120 = vpack.c.b16 %v1098, %v1096
        %v1121 = vpack.c.b16 %v1101, %v1099
        %v1122 = vpack.c.b16 %v1102, %v1100
        %v1123 = vpack.c.b16 %v1105, %v1103
        %v1124 = vpack.c.b16 %v1106, %v1104
        %v1125 = vpack.c.b16 %v1109, %v1107
        %v1126 = vpack.c.b16 %v1110, %v1108
        %1143 = vmatprep.subr.bf16.mxu0 %v1126
        %1144 = vmatpush1.bf16.msra.mxu0 %v1125
        %1145 = vmatprep.subr.bf16.mxu0 %v1124
        %1146 = vmatpush1.bf16.msra.mxu0 %v1123
        %1147 = vmatprep.subr.bf16.mxu0 %v1122
        %1148 = vmatpush1.bf16.msra.mxu0 %v1121
        %1149 = vmatprep.subr.bf16.mxu0 %v1120
        %1150 = vmatpush1.bf16.msra.mxu0 %v1119
        %1151 = vmatprep.subr.bf16.mxu0 %v1118
        %1152 = vmatpush1.bf16.msra.mxu0 %v1117
        %1153 = vmatprep.subr.bf16.mxu0 %v1116
        %1154 = vmatpush1.bf16.msra.mxu0 %v1115
        %1155 = vmatprep.subr.bf16.mxu0 %v1114
        %1156 = vmatpush1.bf16.msra.mxu0 %v1113
        %1157 = vmatprep.subr.bf16.mxu0 %v1112
        %1158 = vmatpush1.bf16.msra.mxu0 %v1111
        %1159 = vmatprep.subr.bf16.mxu0 0
        %1160 = vmatpush2.bf16.msra.mxu0 0
        %1161 = vmatprep.subr.bf16.mxu0 0
        %1162 = vmatpush2.bf16.msra.mxu0 0
        %1163 = vmatprep.subr.bf16.mxu0 0
        %1164 = vmatpush2.bf16.msra.mxu0 0
        %1165 = vmatprep.subr.bf16.mxu0 0
        %1166 = vmatpush2.bf16.msra.mxu0 0
        %1167 = vmatprep.subr.bf16.mxu0 0
        %1168 = vmatpush2.bf16.msra.mxu0 0
        %1169 = vmatprep.subr.bf16.mxu0 0
        %1170 = vmatpush2.bf16.msra.mxu0 0
        %1171 = vmatprep.subr.bf16.mxu0 0
        %1172 = vmatpush2.bf16.msra.mxu0 0
        %1173 = vmatprep.subr.bf16.mxu0 0
        %1174 = vmatpush2.bf16.msra.mxu0 0
        %1175 = vmatprep.mubr.bf16.mxu0 0
        %1176 = vmatmul.mubr.bf16.gmra.mxu0 %v1043
        %v1177 = vpop.f32.mrf.mxu0
        %v1178 = vadd.f32 0.0, %v1177
        %v1179 = vpop.f32.mrf.mxu0
        %v1180 = vadd.f32 0.0, %v1179
        %v1181 = vpop.f32.mrf.mxu0
        %v1182 = vadd.f32 0.0, %v1181
        %v1183 = vpop.f32.mrf.mxu0
        %v1184 = vadd.f32 0.0, %v1183
        %1185 = vmatprep.mubr.bf16.mxu0 0
        %1186 = vmatmul.mubr.bf16.gmra.mxu0 %v1044
        %v1187 = vpop.f32.mrf.mxu0
        %v1188 = vadd.f32 0.0, %v1187
        %v1189 = vpop.f32.mrf.mxu0
        %v1190 = vadd.f32 0.0, %v1189
        %v1191 = vpop.f32.mrf.mxu0
        %v1192 = vadd.f32 0.0, %v1191
        %v1193 = vpop.f32.mrf.mxu0
        %v1194 = vadd.f32 0.0, %v1193
        %1195 = vmatprep.mubr.bf16.mxu0 0
        %1196 = vmatmul.mubr.bf16.gmra.mxu0 %v1045
        %v1197 = vpop.f32.mrf.mxu0
        %v1198 = vadd.f32 0.0, %v1197
        %v1199 = vpop.f32.mrf.mxu0
        %v1200 = vadd.f32 0.0, %v1199
        %v1201 = vpop.f32.mrf.mxu0
        %v1202 = vadd.f32 0.0, %v1201
        %v1203 = vpop.f32.mrf.mxu0
        %v1204 = vadd.f32 0.0, %v1203
        %1205 = vmatprep.mubr.bf16.mxu0 0
        %1206 = vmatmul.mubr.bf16.gmra.mxu0 %v1046
        %v1207 = vpop.f32.mrf.mxu0
        %v1208 = vadd.f32 0.0, %v1207
        %v1209 = vpop.f32.mrf.mxu0
        %v1210 = vadd.f32 0.0, %v1209
        %v1211 = vpop.f32.mrf.mxu0
        %v1212 = vadd.f32 0.0, %v1211
        %v1213 = vpop.f32.mrf.mxu0
        %v1214 = vadd.f32 0.0, %v1213
        %1215 = vdwg.mxu0
        %v1232 = vunpack.c.l.b16 %v1027
        %v1233 = vunpack.c.h.b16 %v1027
        %v1234 = vunpack.c.l.b16 %v1028
        %v1235 = vunpack.c.h.b16 %v1028
        %v1236 = vunpack.c.l.b16 %v1029
        %v1237 = vunpack.c.h.b16 %v1029
        %v1238 = vunpack.c.l.b16 %v1030
        %v1239 = vunpack.c.h.b16 %v1030
        %v1240 = vunpack.c.l.b16 %v1031
        %v1241 = vunpack.c.h.b16 %v1031
        %v1242 = vunpack.c.l.b16 %v1032
        %v1243 = vunpack.c.h.b16 %v1032
        %v1244 = vunpack.c.l.b16 %v1033
        %v1245 = vunpack.c.h.b16 %v1033
        %v1246 = vunpack.c.l.b16 %v1034
        %v1247 = vunpack.c.h.b16 %v1034
        %v1248 = vunpack.c.l.b16 %v1035
        %v1249 = vunpack.c.h.b16 %v1035
        %v1250 = vunpack.c.l.b16 %v1036
        %v1251 = vunpack.c.h.b16 %v1036
        %v1252 = vunpack.c.l.b16 %v1037
        %v1253 = vunpack.c.h.b16 %v1037
        %v1254 = vunpack.c.l.b16 %v1038
        %v1255 = vunpack.c.h.b16 %v1038
        %v1256 = vunpack.c.l.b16 %v1039
        %v1257 = vunpack.c.h.b16 %v1039
        %v1258 = vunpack.c.l.b16 %v1040
        %v1259 = vunpack.c.h.b16 %v1040
        %v1260 = vunpack.c.l.b16 %v1041
        %v1261 = vunpack.c.h.b16 %v1041
        %v1262 = vunpack.c.l.b16 %v1042
        %v1263 = vunpack.c.h.b16 %v1042
        %v1264 = vpack.c.b16 %v1234, %v1232
        %v1265 = vpack.c.b16 %v1235, %v1233
        %v1266 = vpack.c.b16 %v1238, %v1236
        %v1267 = vpack.c.b16 %v1239, %v1237
        %v1268 = vpack.c.b16 %v1242, %v1240
        %v1269 = vpack.c.b16 %v1243, %v1241
        %v1270 = vpack.c.b16 %v1246, %v1244
        %v1271 = vpack.c.b16 %v1247, %v1245
        %v1272 = vpack.c.b16 %v1250, %v1248
        %v1273 = vpack.c.b16 %v1251, %v1249
        %v1274 = vpack.c.b16 %v1254, %v1252
        %v1275 = vpack.c.b16 %v1255, %v1253
        %v1276 = vpack.c.b16 %v1258, %v1256
        %v1277 = vpack.c.b16 %v1259, %v1257
        %v1278 = vpack.c.b16 %v1262, %v1260
        %v1279 = vpack.c.b16 %v1263, %v1261
        %1296 = vmatprep.subr.bf16.mxu0 %v1279
        %1297 = vmatpush1.bf16.msra.mxu0 %v1278
        %1298 = vmatprep.subr.bf16.mxu0 %v1277
        %1299 = vmatpush1.bf16.msra.mxu0 %v1276
        %1300 = vmatprep.subr.bf16.mxu0 %v1275
        %1301 = vmatpush1.bf16.msra.mxu0 %v1274
        %1302 = vmatprep.subr.bf16.mxu0 %v1273
        %1303 = vmatpush1.bf16.msra.mxu0 %v1272
        %1304 = vmatprep.subr.bf16.mxu0 %v1271
        %1305 = vmatpush1.bf16.msra.mxu0 %v1270
        %1306 = vmatprep.subr.bf16.mxu0 %v1269
        %1307 = vmatpush1.bf16.msra.mxu0 %v1268
        %1308 = vmatprep.subr.bf16.mxu0 %v1267
        %1309 = vmatpush1.bf16.msra.mxu0 %v1266
        %1310 = vmatprep.subr.bf16.mxu0 %v1265
        %1311 = vmatpush1.bf16.msra.mxu0 %v1264
        %1312 = vmatprep.subr.bf16.mxu0 0
        %1313 = vmatpush2.bf16.msra.mxu0 0
        %1314 = vmatprep.subr.bf16.mxu0 0
        %1315 = vmatpush2.bf16.msra.mxu0 0
        %1316 = vmatprep.subr.bf16.mxu0 0
        %1317 = vmatpush2.bf16.msra.mxu0 0
        %1318 = vmatprep.subr.bf16.mxu0 0
        %1319 = vmatpush2.bf16.msra.mxu0 0
        %1320 = vmatprep.subr.bf16.mxu0 0
        %1321 = vmatpush2.bf16.msra.mxu0 0
        %1322 = vmatprep.subr.bf16.mxu0 0
        %1323 = vmatpush2.bf16.msra.mxu0 0
        %1324 = vmatprep.subr.bf16.mxu0 0
        %1325 = vmatpush2.bf16.msra.mxu0 0
        %1326 = vmatprep.subr.bf16.mxu0 0
        %1327 = vmatpush2.bf16.msra.mxu0 0
        %1328 = vmatprep.mubr.bf16.mxu0 0
        %1329 = vmatmul.mubr.bf16.gmra.mxu0 %v1023
        %v1330 = vpop.f32.mrf.mxu0
        %v1331 = vadd.f32 %v1178, %v1330
        %v1332 = vpop.f32.mrf.mxu0
        %v1333 = vadd.f32 %v1180, %v1332
        %v1334 = vpop.f32.mrf.mxu0
        %v1335 = vadd.f32 %v1182, %v1334
        %v1336 = vpop.f32.mrf.mxu0
        %v1337 = vadd.f32 %v1184, %v1336
        %1338 = vmatprep.mubr.bf16.mxu0 0
        %1339 = vmatmul.mubr.bf16.gmra.mxu0 %v1024
        %v1340 = vpop.f32.mrf.mxu0
        %v1341 = vadd.f32 %v1188, %v1340
        %v1342 = vpop.f32.mrf.mxu0
        %v1343 = vadd.f32 %v1190, %v1342
        %v1344 = vpop.f32.mrf.mxu0
        %v1345 = vadd.f32 %v1192, %v1344
        %v1346 = vpop.f32.mrf.mxu0
        %v1347 = vadd.f32 %v1194, %v1346
        %1348 = vmatprep.mubr.bf16.mxu0 0
        %1349 = vmatmul.mubr.bf16.gmra.mxu0 %v1025
        %v1350 = vpop.f32.mrf.mxu0
        %v1351 = vadd.f32 %v1198, %v1350
        %v1352 = vpop.f32.mrf.mxu0
        %v1353 = vadd.f32 %v1200, %v1352
        %v1354 = vpop.f32.mrf.mxu0
        %v1355 = vadd.f32 %v1202, %v1354
        %v1356 = vpop.f32.mrf.mxu0
        %v1357 = vadd.f32 %v1204, %v1356
        %1358 = vmatprep.mubr.bf16.mxu0 0
        %1359 = vmatmul.mubr.bf16.gmra.mxu0 %v1026
        %v1360 = vpop.f32.mrf.mxu0
        %v1361 = vadd.f32 %v1208, %v1360
        %v1362 = vpop.f32.mrf.mxu0
        %v1363 = vadd.f32 %v1210, %v1362
        %v1364 = vpop.f32.mrf.mxu0
        %v1365 = vadd.f32 %v1212, %v1364
        %v1366 = vpop.f32.mrf.mxu0
        %v1367 = vadd.f32 %v1214, %v1366
        %1368 = vdwg.mxu0
        %v1369 = vld [vmem:[%s9] sm:$0x3]
        %v1371 = vlaneseq
        %v1372 = vshrl.u32 %v1371, 7
        %v1373 = vsub.s32 0, %v1372
        %v1374 = vrot.slane %v1369, %v1373
        %v1375 = vlaneseq
        %v1376 = vshrl.u32 %v1375, 7
        %v1377 = vsub.s32 1, %v1376
        %v1378 = vrot.slane %v1369, %v1377
        %v1381 = vadd.f32 %v1331, %v1374
        %v1382 = vadd.f32 %v1333, %v1378
        %v1383 = vadd.f32 %v1335, %v1374
        %v1384 = vadd.f32 %v1337, %v1378
        %v1385 = vadd.f32 %v1341, %v1374
        %v1386 = vadd.f32 %v1343, %v1378
        %v1387 = vadd.f32 %v1345, %v1374
        %v1388 = vadd.f32 %v1347, %v1378
        %v1389 = vadd.f32 %v1351, %v1374
        %v1390 = vadd.f32 %v1353, %v1378
        %v1391 = vadd.f32 %v1355, %v1374
        %v1392 = vadd.f32 %v1357, %v1378
        %v1393 = vadd.f32 %v1361, %v1374
        %v1394 = vadd.f32 %v1363, %v1378
        %v1395 = vadd.f32 %v1365, %v1374
        %v1396 = vadd.f32 %v1367, %v1378
        %1397 = vst [vmem:[%s380] sm:$0xff] %v1381
        %1398 = vst [vmem:[%s380 + $0x8] sm:$0xff] %v1382
        %1399 = vst [vmem:[%s380 + $0x10] sm:$0xff] %v1383
        %1400 = vst [vmem:[%s380 + $0x18] sm:$0xff] %v1384
        %1401 = vst [vmem:[%s380 + $0x20] sm:$0xff] %v1385
        %1402 = vst [vmem:[%s380 + $0x28] sm:$0xff] %v1386
        %1403 = vst [vmem:[%s380 + $0x30] sm:$0xff] %v1387
        %1404 = vst [vmem:[%s380 + $0x38] sm:$0xff] %v1388
        %1405 = vst [vmem:[%s380 + $0x40] sm:$0xff] %v1389
        %1406 = vst [vmem:[%s380 + $0x48] sm:$0xff] %v1390
        %1407 = vst [vmem:[%s380 + $0x50] sm:$0xff] %v1391
        %1408 = vst [vmem:[%s380 + $0x58] sm:$0xff] %v1392
        %1409 = vst [vmem:[%s380 + $0x60] sm:$0xff] %v1393
        %1410 = vst [vmem:[%s380 + $0x68] sm:$0xff] %v1394
        %1411 = vst [vmem:[%s380 + $0x70] sm:$0xff] %v1395
        %1412 = vst [vmem:[%s380 + $0x78] sm:$0xff] %v1396
        %s1413 = sand.u32 %s257, 1
        %s1414 = scalar_lea.sflag [#allocation3], %s1413
        %s1415 = sand.u32 %s257, 1
        %s1416 = smul.addr %s1415, 128
        %s1417 = scalar_lea.vmem [#allocation2], %s1416
        // Predicated region
        $region61: #{fofe_layer.1} parent=59 // pred_check
          %p1418 = pneg %p267
        $region62: #{fofe_layer.1} parent=59 // pred_check_branch
          %1420 = sbr.rel (%p1418) target = $region64
        $region63: #{fofe_layer.1} parent=59 // pred_region
          %s1422 = ssub.s32 2048, 2048
          %1423 = vsyncadd %s1414, %s1422
          %s1424 = smul.addr %s24, 16
          %s1425 = smul.addr %s1424, 128
          %s1426 = scalar_lea.hbm %s10, %s1425
          %s1427 = sshll.u32 %s1417, 4
          %s1428 = int_to_ptr.vmem [resolvable:$true] %s1427
          %1433 = dma.vmem_to_hbm [thread:$0]  %s1428, 2048, %s1426, %s1414, 256, 256, 16
        $region64: #{fofe_layer.1} parent=59 // pred_fallthru
          _
      $region60: #{fofe_layer.1} parent=5 // pred_fallthru
        _
      %p1434 = scmp.le.s32.totalorder 2, %s19
      // Predicated region
      $region65: #{fofe_layer.1} parent=5 // pred_check
        %p1435 = pneg %p1434
      $region66: #{fofe_layer.1} parent=5 // pred_check_branch
        %1437 = sbr.rel (%p1435) target = $region68
      $region67: #{fofe_layer.1} parent=5 // pred_region
        %s1438 = ssub.s32 %s19, 2
        // Predicated region
        $region69: #{fofe_layer.1} parent=67 // pred_check
          %p1439 = pneg %p273
        $region70: #{fofe_layer.1} parent=67 // pred_check_branch
          %1441 = sbr.rel (%p1439) target = $region72
        $region71: #{fofe_layer.1} parent=67 // pred_region
          %s1442 = sand.u32 %s258, 1
          %s1443 = scalar_lea.sflag [#allocation3], %s1442
          %s1444 = sand.u32 %s258, 1
          %s1445 = smul.addr %s1444, 128
          %s1446 = scalar_lea.vmem [#allocation2], %s1445
          %1447 = dma.done %s1443, 2048
        $region72: #{fofe_layer.1} parent=67 // pred_fallthru
          _
      $region68: #{fofe_layer.1} parent=5 // pred_fallthru
        _
    $region6: #{fofe_layer.1} parent=1 // loop_footer
      %s23 = sadd.s32 1, %s19
    $region7: #{fofe_layer.1} parent=1 // loop_footer_branch
      %18 = sbr.rel target = $region3
    $region8: #{fofe_layer.1} parent=1 // loop_exit
      _
    %1448 = vsyncpa [#allocation3], 1
    %s1449 = scalar_lea.sflag [#allocation3], 1
    %1450 = vsyncpa %s1449, 1

</llo_original>
